<compile_context>
chip_gen: v7x
topology: tpu7x:2x2x1
jax: 0.10.0
libtpu: 0.0.40
codegen_flags: <defaults>
</compile_context>

<pallas_src>
import functools
import math

import jax
import jax.numpy as jnp
from jax import lax
from jax.experimental import pallas as pl
from jax.experimental.pallas import tpu as pltpu


# ----------------------------- config ---------------------------------------
class Cfg:
    block_size = 16
    vocab_size = 128
    n_layer = 2
    n_head = 2
    n_embd = 32


# ----------------------------- kernel helpers --------------------------------
def _layernorm(x, w, b, eps=1e-5):
    # x: (T, C); w, b: (1, C)
    mu = jnp.mean(x, axis=-1, keepdims=True)
    xc = x - mu
    var = jnp.mean(xc * xc, axis=-1, keepdims=True)
    return xc * lax.rsqrt(var + eps) * w + b


def _gelu_tanh(x):
    # PyTorch nn.GELU(approximate='tanh')
    c = 0.7978845608028654  # sqrt(2/pi)
    return 0.5 * x * (1.0 + jnp.tanh(c * (x + 0.044715 * x * x * x)))


# ----------------------------- fused GPT kernel ------------------------------
def gpt_fused_kernel(x_ref,
                     ln1w_ref, ln1b_ref,
                     wqkv_ref, bqkv_ref,
                     pw_ref, pb_ref,
                     ln2w_ref, ln2b_ref,
                     fcw_ref, fcb_ref, fpw_ref, fpb_ref,
                     lnfw_ref, lnfb_ref, wteT_ref,
                     out_ref, *, n_layer, n_head, head_dim):
    x = x_ref[0]                     # (T, C) f32 residual stream for one batch
    T, C = x.shape
    scale = 1.0 / math.sqrt(head_dim)

    # Per-block causal mask built in-kernel (cheap VPU iota, no HBM traffic).
    row = lax.broadcasted_iota(jnp.int32, (T, T), 0)
    col = lax.broadcasted_iota(jnp.int32, (T, T), 1)
    mask_bias = jnp.where(col <= row, 0.0, -1e30).astype(jnp.float32)

    # Static (fully unrolled) loop over layers: weights are VMEM resident and
    # indexed with static offsets.  Fine at L=2 (see TODO above for deep nets).
    for l in range(n_layer):
        # --- attention branch: x + c_proj(attn(ln_1(x))) ---
        h = _layernorm(x, ln1w_ref[l], ln1b_ref[l])
        qkv = jnp.dot(h.astype(jnp.bfloat16), wqkv_ref[l],
                      preferred_element_type=jnp.float32) + bqkv_ref[l]  # (T, 3C)
        heads = []
        for hh in range(n_head):
            q = qkv[:, hh * head_dim:(hh + 1) * head_dim] * scale
            k = qkv[:, C + hh * head_dim:C + (hh + 1) * head_dim]
            v = qkv[:, 2 * C + hh * head_dim:2 * C + (hh + 1) * head_dim]
            s = lax.dot_general(q.astype(jnp.bfloat16), k.astype(jnp.bfloat16),
                                (((1,), (1,)), ((), ())),
                                preferred_element_type=jnp.float32)       # (T, T)
            s = s + mask_bias
            s = s - jnp.max(s, axis=-1, keepdims=True)
            p = jnp.exp(s)
            p = p * pl.reciprocal(jnp.sum(p, axis=-1, keepdims=True), approx=True)
            heads.append(jnp.dot(p.astype(jnp.bfloat16), v.astype(jnp.bfloat16),
                                 preferred_element_type=jnp.float32))     # (T, hd)
        y = jnp.concatenate(heads, axis=-1)                               # (T, C)
        attn = jnp.dot(y.astype(jnp.bfloat16), pw_ref[l],
                       preferred_element_type=jnp.float32) + pb_ref[l]
        x = x + attn

        # --- MLP branch: x + c_proj(gelu(c_fc(ln_2(x)))) ---
        h2 = _layernorm(x, ln2w_ref[l], ln2b_ref[l])
        h2 = jnp.dot(h2.astype(jnp.bfloat16), fcw_ref[l],
                     preferred_element_type=jnp.float32) + fcb_ref[l]
        h2 = _gelu_tanh(h2)
        x = x + jnp.dot(h2.astype(jnp.bfloat16), fpw_ref[l],
                        preferred_element_type=jnp.float32) + fpb_ref[l]

    # --- final LayerNorm + tied lm_head: logits = ln_f(x) @ wte.T ---
    # wte was pre-transposed on the host to (C, V): canonical MXU orientation,
    # lane-dense V=128 output, no in-kernel relayout of the (V, C) operand.
    h = _layernorm(x, lnfw_ref[...], lnfb_ref[...])
    logits = jnp.dot(h.astype(jnp.bfloat16), wteT_ref[...],
                     preferred_element_type=jnp.float32)                  # (T, V)
    out_ref[0] = logits


def gpt_fused_forward(x, packed, cfg):
    B, T, C = x.shape
    V = cfg.vocab_size

    weights = [
        packed["ln1_w"], packed["ln1_b"],
        packed["wqkv"], packed["bqkv"],
        packed["pw"], packed["pb"],
        packed["ln2_w"], packed["ln2_b"],
        packed["fc_w"], packed["fc_b"], packed["fp_w"], packed["fp_b"],
        packed["lnf_w"], packed["lnf_b"], packed["wte_T"],
    ]
    vmem_full = pl.BlockSpec(memory_space=pltpu.MemorySpace.VMEM)

    kernel = functools.partial(
        gpt_fused_kernel,
        n_layer=cfg.n_layer, n_head=cfg.n_head,
        head_dim=cfg.n_embd // cfg.n_head)

    return pl.pallas_call(
        kernel,
        out_shape=jax.ShapeDtypeStruct((B, T, V), jnp.float32),
        grid=(B,),
        in_specs=[pl.BlockSpec((1, T, C), lambda b: (b, 0, 0))]
                 + [vmem_full] * len(weights),
        out_specs=pl.BlockSpec((1, T, V), lambda b: (b, 0, 0)),
        compiler_params=pltpu.CompilerParams(
            dimension_semantics=("parallel",),          # megacore on v7x
            vmem_limit_bytes=32 * 1024 * 1024),
    )(x, *weights)


# ----------------------------- parameter init --------------------------------
def init_gpt_params(key, cfg):
    C, V, L = cfg.n_embd, cfg.vocab_size, cfg.n_layer
    std = 0.02
    std_resid = 0.02 * (2 * L) ** (-0.5)

    def normal(k, shape, s):
        return jax.random.normal(k, shape, jnp.float32) * s

    keys = jax.random.split(key, 2 + 6 * L)
    params = {
        "wte": normal(keys[0], (V, C), std),              # tied with lm_head
        "wpe": normal(keys[1], (cfg.block_size, C), std),
        "lnf_w": jnp.ones((1, C), jnp.float32),
        "lnf_b": jnp.zeros((1, C), jnp.float32),
        "blocks": [],
    }
    for l in range(L):
        kb = keys[2 + 6 * l: 2 + 6 * (l + 1)]
        params["blocks"].append({
            "ln1_w": jnp.ones((1, C), jnp.float32),
            "ln1_b": jnp.zeros((1, C), jnp.float32),
            "attn_w": normal(kb[0], (C, 3 * C), std),      # [in, out] layout
            "attn_b": jnp.zeros((1, 3 * C), jnp.float32),
            "proj_w": normal(kb[1], (C, C), std_resid),
            "proj_b": jnp.zeros((1, C), jnp.float32),
            "ln2_w": jnp.ones((1, C), jnp.float32),
            "ln2_b": jnp.zeros((1, C), jnp.float32),
            "fc_w": normal(kb[2], (C, 4 * C), std),
            "fc_b": jnp.zeros((1, 4 * C), jnp.float32),
            "fcproj_w": normal(kb[3], (4 * C, C), std_resid),
            "fcproj_b": jnp.zeros((1, C), jnp.float32),
        })
    return params


def pack_gpt_params(params, cfg):
    """Stack per-layer weights (leading L dim); matmul weights pre-cast to bf16."""
    def stack(name, dtype=jnp.float32):
        return jnp.stack([b[name] for b in params["blocks"]], axis=0).astype(dtype)

    packed = {
        "ln1_w": stack("ln1_w"), "ln1_b": stack("ln1_b"),
        "wqkv": stack("attn_w", jnp.bfloat16),     # (L, C, 3C) bf16
        "bqkv": stack("attn_b"),                   # (L, 1, 3C) f32
        "pw": stack("proj_w", jnp.bfloat16),       # (L, C, C) bf16
        "pb": stack("proj_b"),
        "ln2_w": stack("ln2_w"), "ln2_b": stack("ln2_b"),
        "fc_w": stack("fc_w", jnp.bfloat16),       # (L, C, 4C) bf16
        "fc_b": stack("fc_b"),
        "fp_w": stack("fcproj_w", jnp.bfloat16),   # (L, 4C, C) bf16
        "fp_b": stack("fcproj_b"),
        "lnf_w": params["lnf_w"], "lnf_b": params["lnf_b"],
        "wte_T": params["wte"].T.astype(jnp.bfloat16),   # (C, V) lm_head operand
        "wte": params["wte"],                            # f32 for embedding gather
        "wpe": params["wpe"],
    }
    return packed


# ----------------------------- full model forward ----------------------------
def gpt_forward(packed, tokens, cfg):
    B, T = tokens.shape
    assert T <= cfg.block_size

    # Embedding-table gathers stay in plain JAX (glue).
    tok_embd = jnp.take(packed["wte"], tokens, axis=0)    # (B, T, C)
    pos_embd = packed["wpe"][:T]                          # (T, C)
    x = tok_embd + pos_embd[None, :, :]                   # (B, T, C) f32

    logits = gpt_fused_forward(x, packed, cfg)            # (B, T, V)
    loss = None  # TODO(synk): cross-entropy loss path (targets) not exercised here
    return logits, loss


# ----------------------------- main ------------------------------------------
if __name__ == "__main__":
    cfg = Cfg()
    key = jax.random.PRNGKey(0)
    k_param, k_tok = jax.random.split(key)

    params = init_gpt_params(k_param, cfg)
    packed = pack_gpt_params(params, cfg)

    B, T = 2, 8
    tokens = jax.random.randint(k_tok, (B, T), 0, cfg.vocab_size, dtype=jnp.int32)

    fwd = jax.jit(lambda p, t: gpt_forward(p, t, cfg))
    logits, loss = fwd(packed, tokens)
    logits = jax.block_until_ready(logits)

    assert logits.shape == (B, T, cfg.vocab_size)
    assert bool(jnp.all(jnp.isfinite(logits)))
    print("KERNEL_OK")
</pallas_src>

<mosaic_0001>
module attributes {stable_mosaic.version = 11 : i64} {
  func.func @gpt_fused_kernel(%arg0: i32, %arg1: memref<1x8x32xf32, #tpu.memory_space<vmem>>, %arg2: memref<2x1x32xf32, #tpu.memory_space<vmem>>, %arg3: memref<2x1x32xf32, #tpu.memory_space<vmem>>, %arg4: memref<2x32x96xbf16, #tpu.memory_space<vmem>>, %arg5: memref<2x1x96xf32, #tpu.memory_space<vmem>>, %arg6: memref<2x32x32xbf16, #tpu.memory_space<vmem>>, %arg7: memref<2x1x32xf32, #tpu.memory_space<vmem>>, %arg8: memref<2x1x32xf32, #tpu.memory_space<vmem>>, %arg9: memref<2x1x32xf32, #tpu.memory_space<vmem>>, %arg10: memref<2x32x128xbf16, #tpu.memory_space<vmem>>, %arg11: memref<2x1x128xf32, #tpu.memory_space<vmem>>, %arg12: memref<2x128x32xbf16, #tpu.memory_space<vmem>>, %arg13: memref<2x1x32xf32, #tpu.memory_space<vmem>>, %arg14: memref<1x32xf32, #tpu.memory_space<vmem>>, %arg15: memref<1x32xf32, #tpu.memory_space<vmem>>, %arg16: memref<32x128xbf16, #tpu.memory_space<vmem>>, %arg17: memref<1x8x128xf32, #tpu.memory_space<vmem>>) attributes {dimension_semantics = [#tpu.dimension_semantics<parallel>], iteration_bounds = array<i64: 2>, scalar_prefetch = 0 : i64, scratch_operands = 0 : i64, tpu.core_type = #tpu.core_type<tc>, window_params = [{transform_indices = @transform_0, window_bounds = array<i64: 1, 8, 32>}, {pipeline_mode = #tpu.pipeline_mode<synchronous>, transform_indices = @transform_1, window_bounds = array<i64: 2, 1, 32>}, {pipeline_mode = #tpu.pipeline_mode<synchronous>, transform_indices = @transform_2, window_bounds = array<i64: 2, 1, 32>}, {pipeline_mode = #tpu.pipeline_mode<synchronous>, transform_indices = @transform_3, window_bounds = array<i64: 2, 32, 96>}, {pipeline_mode = #tpu.pipeline_mode<synchronous>, transform_indices = @transform_4, window_bounds = array<i64: 2, 1, 96>}, {pipeline_mode = #tpu.pipeline_mode<synchronous>, transform_indices = @transform_5, window_bounds = array<i64: 2, 32, 32>}, {pipeline_mode = #tpu.pipeline_mode<synchronous>, transform_indices = @transform_6, window_bounds = array<i64: 2, 1, 32>}, {pipeline_mode = #tpu.pipeline_mode<synchronous>, transform_indices = @transform_7, window_bounds = array<i64: 2, 1, 32>}, {pipeline_mode = #tpu.pipeline_mode<synchronous>, transform_indices = @transform_8, window_bounds = array<i64: 2, 1, 32>}, {pipeline_mode = #tpu.pipeline_mode<synchronous>, transform_indices = @transform_9, window_bounds = array<i64: 2, 32, 128>}, {pipeline_mode = #tpu.pipeline_mode<synchronous>, transform_indices = @transform_10, window_bounds = array<i64: 2, 1, 128>}, {pipeline_mode = #tpu.pipeline_mode<synchronous>, transform_indices = @transform_11, window_bounds = array<i64: 2, 128, 32>}, {pipeline_mode = #tpu.pipeline_mode<synchronous>, transform_indices = @transform_12, window_bounds = array<i64: 2, 1, 32>}, {pipeline_mode = #tpu.pipeline_mode<synchronous>, transform_indices = @transform_13, window_bounds = array<i64: 1, 32>}, {pipeline_mode = #tpu.pipeline_mode<synchronous>, transform_indices = @transform_14, window_bounds = array<i64: 1, 32>}, {pipeline_mode = #tpu.pipeline_mode<synchronous>, transform_indices = @transform_15, window_bounds = array<i64: 32, 128>}, {transform_indices = @transform_16, window_bounds = array<i64: 1, 8, 128>}]} {
    %c0 = arith.constant 0 : index
    %c0_0 = arith.constant 0 : index
    %c0_1 = arith.constant 0 : index
    %0 = vector.load %arg1[%c0, %c0_0, %c0_1] : memref<1x8x32xf32, #tpu.memory_space<vmem>>, vector<1x8x32xf32>
    %1 = vector.shape_cast %0 : vector<1x8x32xf32> to vector<8x32xf32>
    %2 = tpu.iota {dimensions = array<i32: 0>} : vector<8x8xi32>
    %3 = tpu.iota {dimensions = array<i32: 1>} : vector<8x8xi32>
    %4 = arith.cmpi sle, %3, %2 : vector<8x8xi32>
    %cst = arith.constant 0.000000e+00 : f32
    %cst_2 = arith.constant -1.000000e+30 : f32
    %5 = vector.broadcast %cst : f32 to vector<8x8xf32>
    %6 = vector.broadcast %cst_2 : f32 to vector<8x8xf32>
    %7 = arith.select %4, %5, %6 : vector<8x8xi1>, vector<8x8xf32>
    %c0_3 = arith.constant 0 : index
    %c0_4 = arith.constant 0 : index
    %c0_5 = arith.constant 0 : index
    %8 = vector.load %arg2[%c0_3, %c0_4, %c0_5] : memref<2x1x32xf32, #tpu.memory_space<vmem>>, vector<1x1x32xf32>
    %9 = vector.shape_cast %8 : vector<1x1x32xf32> to vector<1x32xf32>
    %c0_6 = arith.constant 0 : index
    %c0_7 = arith.constant 0 : index
    %c0_8 = arith.constant 0 : index
    %10 = vector.load %arg3[%c0_6, %c0_7, %c0_8] : memref<2x1x32xf32, #tpu.memory_space<vmem>>, vector<1x1x32xf32>
    %11 = vector.shape_cast %10 : vector<1x1x32xf32> to vector<1x32xf32>
    %cst_9 = arith.constant dense<0.000000e+00> : vector<8xf32>
    %12 = vector.multi_reduction <add>, %1, %cst_9 [1] : vector<8x32xf32> to vector<8xf32>
    %13 = vector.shape_cast %12 : vector<8xf32> to vector<8x1xf32>
    %cst_10 = arith.constant 3.200000e+01 : f32
    %14 = vector.broadcast %cst_10 : f32 to vector<8x1xf32>
    %15 = arith.divf %13, %14 : vector<8x1xf32>
    %16 = vector.broadcast %15 : vector<8x1xf32> to vector<8x32xf32>
    %17 = arith.subf %1, %16 : vector<8x32xf32>
    %18 = arith.mulf %17, %17 : vector<8x32xf32>
    %cst_11 = arith.constant dense<0.000000e+00> : vector<8xf32>
    %19 = vector.multi_reduction <add>, %18, %cst_11 [1] : vector<8x32xf32> to vector<8xf32>
    %20 = vector.shape_cast %19 : vector<8xf32> to vector<8x1xf32>
    %cst_12 = arith.constant 3.200000e+01 : f32
    %21 = vector.broadcast %cst_12 : f32 to vector<8x1xf32>
    %22 = arith.divf %20, %21 : vector<8x1xf32>
    %cst_13 = arith.constant 9.99999974E-6 : f32
    %23 = vector.broadcast %cst_13 : f32 to vector<8x1xf32>
    %24 = arith.addf %22, %23 : vector<8x1xf32>
    %25 = math.rsqrt %24 : vector<8x1xf32>
    %26 = vector.broadcast %25 : vector<8x1xf32> to vector<8x32xf32>
    %27 = arith.mulf %17, %26 : vector<8x32xf32>
    %28 = vector.broadcast %9 : vector<1x32xf32> to vector<8x32xf32>
    %29 = arith.mulf %27, %28 : vector<8x32xf32>
    %30 = vector.broadcast %11 : vector<1x32xf32> to vector<8x32xf32>
    %31 = arith.addf %29, %30 : vector<8x32xf32>
    %32 = arith.truncf %31 : vector<8x32xf32> to vector<8x32xbf16>
    %c0_14 = arith.constant 0 : index
    %c0_15 = arith.constant 0 : index
    %c0_16 = arith.constant 0 : index
    %33 = vector.load %arg4[%c0_14, %c0_15, %c0_16] : memref<2x32x96xbf16, #tpu.memory_space<vmem>>, vector<1x32x96xbf16>
    %34 = vector.shape_cast %33 : vector<1x32x96xbf16> to vector<32x96xbf16>
    %cst_17 = arith.constant dense<0.000000e+00> : vector<8x96xf32>
    %35 = tpu.matmul %32, %34, %cst_17 {dimension_numbers = #tpu.dot_dimension_numbers<[1], [0], [0], [1], [0, 0, 1, 1], [], []>} : vector<8x32xbf16>, vector<32x96xbf16>, vector<8x96xf32> -> vector<8x96xf32>
    %c0_18 = arith.constant 0 : index
    %c0_19 = arith.constant 0 : index
    %c0_20 = arith.constant 0 : index
    %36 = vector.load %arg5[%c0_18, %c0_19, %c0_20] : memref<2x1x96xf32, #tpu.memory_space<vmem>>, vector<1x1x96xf32>
    %37 = vector.shape_cast %36 : vector<1x1x96xf32> to vector<1x96xf32>
    %38 = vector.broadcast %37 : vector<1x96xf32> to vector<8x96xf32>
    %39 = arith.addf %35, %38 : vector<8x96xf32>
    %40 = vector.extract_strided_slice %39 {offsets = [0, 0], sizes = [8, 16], strides = [1, 1]} : vector<8x96xf32> to vector<8x16xf32>
    %cst_21 = arith.constant 2.500000e-01 : f32
    %41 = vector.broadcast %cst_21 : f32 to vector<8x16xf32>
    %42 = arith.mulf %40, %41 : vector<8x16xf32>
    %43 = vector.extract_strided_slice %39 {offsets = [0, 32], sizes = [8, 16], strides = [1, 1]} : vector<8x96xf32> to vector<8x16xf32>
    %44 = vector.extract_strided_slice %39 {offsets = [0, 64], sizes = [8, 16], strides = [1, 1]} : vector<8x96xf32> to vector<8x16xf32>
    %45 = arith.truncf %42 : vector<8x16xf32> to vector<8x16xbf16>
    %46 = arith.truncf %43 : vector<8x16xf32> to vector<8x16xbf16>
    %cst_22 = arith.constant dense<0.000000e+00> : vector<8x8xf32>
    %47 = tpu.matmul %45, %46, %cst_22 {dimension_numbers = #tpu.dot_dimension_numbers<[1], [1], [0], [0], [0, 0, 1, 0], [], []>} : vector<8x16xbf16>, vector<8x16xbf16>, vector<8x8xf32> -> vector<8x8xf32>
    %48 = arith.addf %47, %7 : vector<8x8xf32>
    %cst_23 = arith.constant dense<0xFF800000> : vector<8xf32>
    %49 = vector.multi_reduction <maximumf>, %48, %cst_23 [1] : vector<8x8xf32> to vector<8xf32>
    %50 = vector.shape_cast %49 : vector<8xf32> to vector<8x1xf32>
    %51 = vector.broadcast %50 : vector<8x1xf32> to vector<8x8xf32>
    %52 = arith.subf %48, %51 : vector<8x8xf32>
    %53 = math.exp %52 : vector<8x8xf32>
    %cst_24 = arith.constant dense<0.000000e+00> : vector<8xf32>
    %54 = vector.multi_reduction <add>, %53, %cst_24 [1] : vector<8x8xf32> to vector<8xf32>
    %55 = vector.shape_cast %54 : vector<8xf32> to vector<8x1xf32>
    %56 = tpu.reciprocal %55 {approx = true} : vector<8x1xf32> -> vector<8x1xf32>
    %57 = vector.broadcast %56 : vector<8x1xf32> to vector<8x8xf32>
    %58 = arith.mulf %53, %57 : vector<8x8xf32>
    %59 = arith.truncf %58 : vector<8x8xf32> to vector<8x8xbf16>
    %60 = arith.truncf %44 : vector<8x16xf32> to vector<8x16xbf16>
    %cst_25 = arith.constant dense<0.000000e+00> : vector<8x16xf32>
    %61 = tpu.matmul %59, %60, %cst_25 {dimension_numbers = #tpu.dot_dimension_numbers<[1], [0], [0], [1], [0, 0, 1, 1], [], []>} : vector<8x8xbf16>, vector<8x16xbf16>, vector<8x16xf32> -> vector<8x16xf32>
    %62 = vector.extract_strided_slice %39 {offsets = [0, 16], sizes = [8, 16], strides = [1, 1]} : vector<8x96xf32> to vector<8x16xf32>
    %cst_26 = arith.constant 2.500000e-01 : f32
    %63 = vector.broadcast %cst_26 : f32 to vector<8x16xf32>
    %64 = arith.mulf %62, %63 : vector<8x16xf32>
    %65 = vector.extract_strided_slice %39 {offsets = [0, 48], sizes = [8, 16], strides = [1, 1]} : vector<8x96xf32> to vector<8x16xf32>
    %66 = vector.extract_strided_slice %39 {offsets = [0, 80], sizes = [8, 16], strides = [1, 1]} : vector<8x96xf32> to vector<8x16xf32>
    %67 = arith.truncf %64 : vector<8x16xf32> to vector<8x16xbf16>
    %68 = arith.truncf %65 : vector<8x16xf32> to vector<8x16xbf16>
    %cst_27 = arith.constant dense<0.000000e+00> : vector<8x8xf32>
    %69 = tpu.matmul %67, %68, %cst_27 {dimension_numbers = #tpu.dot_dimension_numbers<[1], [1], [0], [0], [0, 0, 1, 0], [], []>} : vector<8x16xbf16>, vector<8x16xbf16>, vector<8x8xf32> -> vector<8x8xf32>
    %70 = arith.addf %69, %7 : vector<8x8xf32>
    %cst_28 = arith.constant dense<0xFF800000> : vector<8xf32>
    %71 = vector.multi_reduction <maximumf>, %70, %cst_28 [1] : vector<8x8xf32> to vector<8xf32>
    %72 = vector.shape_cast %71 : vector<8xf32> to vector<8x1xf32>
    %73 = vector.broadcast %72 : vector<8x1xf32> to vector<8x8xf32>
    %74 = arith.subf %70, %73 : vector<8x8xf32>
    %75 = math.exp %74 : vector<8x8xf32>
    %cst_29 = arith.constant dense<0.000000e+00> : vector<8xf32>
    %76 = vector.multi_reduction <add>, %75, %cst_29 [1] : vector<8x8xf32> to vector<8xf32>
    %77 = vector.shape_cast %76 : vector<8xf32> to vector<8x1xf32>
    %78 = tpu.reciprocal %77 {approx = true} : vector<8x1xf32> -> vector<8x1xf32>
    %79 = vector.broadcast %78 : vector<8x1xf32> to vector<8x8xf32>
    %80 = arith.mulf %75, %79 : vector<8x8xf32>
    %81 = arith.truncf %80 : vector<8x8xf32> to vector<8x8xbf16>
    %82 = arith.truncf %66 : vector<8x16xf32> to vector<8x16xbf16>
    %cst_30 = arith.constant dense<0.000000e+00> : vector<8x16xf32>
    %83 = tpu.matmul %81, %82, %cst_30 {dimension_numbers = #tpu.dot_dimension_numbers<[1], [0], [0], [1], [0, 0, 1, 1], [], []>} : vector<8x8xbf16>, vector<8x16xbf16>, vector<8x16xf32> -> vector<8x16xf32>
    %84 = tpu.concatenate %61, %83 in 1 : vector<8x16xf32>, vector<8x16xf32> -> vector<8x32xf32>
    %85 = arith.truncf %84 : vector<8x32xf32> to vector<8x32xbf16>
    %c0_31 = arith.constant 0 : index
    %c0_32 = arith.constant 0 : index
    %c0_33 = arith.constant 0 : index
    %86 = vector.load %arg6[%c0_31, %c0_32, %c0_33] : memref<2x32x32xbf16, #tpu.memory_space<vmem>>, vector<1x32x32xbf16>
    %87 = vector.shape_cast %86 : vector<1x32x32xbf16> to vector<32x32xbf16>
    %cst_34 = arith.constant dense<0.000000e+00> : vector<8x32xf32>
    %88 = tpu.matmul %85, %87, %cst_34 {dimension_numbers = #tpu.dot_dimension_numbers<[1], [0], [0], [1], [0, 0, 1, 1], [], []>} : vector<8x32xbf16>, vector<32x32xbf16>, vector<8x32xf32> -> vector<8x32xf32>
    %c0_35 = arith.constant 0 : index
    %c0_36 = arith.constant 0 : index
    %c0_37 = arith.constant 0 : index
    %89 = vector.load %arg7[%c0_35, %c0_36, %c0_37] : memref<2x1x32xf32, #tpu.memory_space<vmem>>, vector<1x1x32xf32>
    %90 = vector.shape_cast %89 : vector<1x1x32xf32> to vector<1x32xf32>
    %91 = vector.broadcast %90 : vector<1x32xf32> to vector<8x32xf32>
    %92 = arith.addf %88, %91 : vector<8x32xf32>
    %93 = arith.addf %1, %92 : vector<8x32xf32>
    %c0_38 = arith.constant 0 : index
    %c0_39 = arith.constant 0 : index
    %c0_40 = arith.constant 0 : index
    %94 = vector.load %arg8[%c0_38, %c0_39, %c0_40] : memref<2x1x32xf32, #tpu.memory_space<vmem>>, vector<1x1x32xf32>
    %95 = vector.shape_cast %94 : vector<1x1x32xf32> to vector<1x32xf32>
    %c0_41 = arith.constant 0 : index
    %c0_42 = arith.constant 0 : index
    %c0_43 = arith.constant 0 : index
    %96 = vector.load %arg9[%c0_41, %c0_42, %c0_43] : memref<2x1x32xf32, #tpu.memory_space<vmem>>, vector<1x1x32xf32>
    %97 = vector.shape_cast %96 : vector<1x1x32xf32> to vector<1x32xf32>
    %cst_44 = arith.constant dense<0.000000e+00> : vector<8xf32>
    %98 = vector.multi_reduction <add>, %93, %cst_44 [1] : vector<8x32xf32> to vector<8xf32>
    %99 = vector.shape_cast %98 : vector<8xf32> to vector<8x1xf32>
    %cst_45 = arith.constant 3.200000e+01 : f32
    %100 = vector.broadcast %cst_45 : f32 to vector<8x1xf32>
    %101 = arith.divf %99, %100 : vector<8x1xf32>
    %102 = vector.broadcast %101 : vector<8x1xf32> to vector<8x32xf32>
    %103 = arith.subf %93, %102 : vector<8x32xf32>
    %104 = arith.mulf %103, %103 : vector<8x32xf32>
    %cst_46 = arith.constant dense<0.000000e+00> : vector<8xf32>
    %105 = vector.multi_reduction <add>, %104, %cst_46 [1] : vector<8x32xf32> to vector<8xf32>
    %106 = vector.shape_cast %105 : vector<8xf32> to vector<8x1xf32>
    %cst_47 = arith.constant 3.200000e+01 : f32
    %107 = vector.broadcast %cst_47 : f32 to vector<8x1xf32>
    %108 = arith.divf %106, %107 : vector<8x1xf32>
    %cst_48 = arith.constant 9.99999974E-6 : f32
    %109 = vector.broadcast %cst_48 : f32 to vector<8x1xf32>
    %110 = arith.addf %108, %109 : vector<8x1xf32>
    %111 = math.rsqrt %110 : vector<8x1xf32>
    %112 = vector.broadcast %111 : vector<8x1xf32> to vector<8x32xf32>
    %113 = arith.mulf %103, %112 : vector<8x32xf32>
    %114 = vector.broadcast %95 : vector<1x32xf32> to vector<8x32xf32>
    %115 = arith.mulf %113, %114 : vector<8x32xf32>
    %116 = vector.broadcast %97 : vector<1x32xf32> to vector<8x32xf32>
    %117 = arith.addf %115, %116 : vector<8x32xf32>
    %118 = arith.truncf %117 : vector<8x32xf32> to vector<8x32xbf16>
    %c0_49 = arith.constant 0 : index
    %c0_50 = arith.constant 0 : index
    %c0_51 = arith.constant 0 : index
    %119 = vector.load %arg10[%c0_49, %c0_50, %c0_51] : memref<2x32x128xbf16, #tpu.memory_space<vmem>>, vector<1x32x128xbf16>
    %120 = vector.shape_cast %119 : vector<1x32x128xbf16> to vector<32x128xbf16>
    %cst_52 = arith.constant dense<0.000000e+00> : vector<8x128xf32>
    %121 = tpu.matmul %118, %120, %cst_52 {dimension_numbers = #tpu.dot_dimension_numbers<[1], [0], [0], [1], [0, 0, 1, 1], [], []>} : vector<8x32xbf16>, vector<32x128xbf16>, vector<8x128xf32> -> vector<8x128xf32>
    %c0_53 = arith.constant 0 : index
    %c0_54 = arith.constant 0 : index
    %c0_55 = arith.constant 0 : index
    %122 = vector.load %arg11[%c0_53, %c0_54, %c0_55] : memref<2x1x128xf32, #tpu.memory_space<vmem>>, vector<1x1x128xf32>
    %123 = vector.shape_cast %122 : vector<1x1x128xf32> to vector<1x128xf32>
    %124 = vector.broadcast %123 : vector<1x128xf32> to vector<8x128xf32>
    %125 = arith.addf %121, %124 : vector<8x128xf32>
    %cst_56 = arith.constant 5.000000e-01 : f32
    %126 = vector.broadcast %cst_56 : f32 to vector<8x128xf32>
    %127 = arith.mulf %126, %125 : vector<8x128xf32>
    %cst_57 = arith.constant 4.471500e-02 : f32
    %128 = vector.broadcast %cst_57 : f32 to vector<8x128xf32>
    %129 = arith.mulf %128, %125 : vector<8x128xf32>
    %130 = arith.mulf %129, %125 : vector<8x128xf32>
    %131 = arith.mulf %130, %125 : vector<8x128xf32>
    %132 = arith.addf %125, %131 : vector<8x128xf32>
    %cst_58 = arith.constant 0.797884583 : f32
    %133 = vector.broadcast %cst_58 : f32 to vector<8x128xf32>
    %134 = arith.mulf %133, %132 : vector<8x128xf32>
    %135 = math.tanh %134 : vector<8x128xf32>
    %cst_59 = arith.constant 1.000000e+00 : f32
    %136 = vector.broadcast %cst_59 : f32 to vector<8x128xf32>
    %137 = arith.addf %136, %135 : vector<8x128xf32>
    %138 = arith.mulf %127, %137 : vector<8x128xf32>
    %139 = arith.truncf %138 : vector<8x128xf32> to vector<8x128xbf16>
    %c0_60 = arith.constant 0 : index
    %c0_61 = arith.constant 0 : index
    %c0_62 = arith.constant 0 : index
    %140 = vector.load %arg12[%c0_60, %c0_61, %c0_62] : memref<2x128x32xbf16, #tpu.memory_space<vmem>>, vector<1x128x32xbf16>
    %141 = vector.shape_cast %140 : vector<1x128x32xbf16> to vector<128x32xbf16>
    %cst_63 = arith.constant dense<0.000000e+00> : vector<8x32xf32>
    %142 = tpu.matmul %139, %141, %cst_63 {dimension_numbers = #tpu.dot_dimension_numbers<[1], [0], [0], [1], [0, 0, 1, 1], [], []>} : vector<8x128xbf16>, vector<128x32xbf16>, vector<8x32xf32> -> vector<8x32xf32>
    %143 = arith.addf %93, %142 : vector<8x32xf32>
    %c0_64 = arith.constant 0 : index
    %c0_65 = arith.constant 0 : index
    %c0_66 = arith.constant 0 : index
    %144 = vector.load %arg13[%c0_64, %c0_65, %c0_66] : memref<2x1x32xf32, #tpu.memory_space<vmem>>, vector<1x1x32xf32>
    %145 = vector.shape_cast %144 : vector<1x1x32xf32> to vector<1x32xf32>
    %146 = vector.broadcast %145 : vector<1x32xf32> to vector<8x32xf32>
    %147 = arith.addf %143, %146 : vector<8x32xf32>
    %c1 = arith.constant 1 : index
    %c0_67 = arith.constant 0 : index
    %c0_68 = arith.constant 0 : index
    %148 = vector.load %arg2[%c1, %c0_67, %c0_68] : memref<2x1x32xf32, #tpu.memory_space<vmem>>, vector<1x1x32xf32>
    %149 = vector.shape_cast %148 : vector<1x1x32xf32> to vector<1x32xf32>
    %c1_69 = arith.constant 1 : index
    %c0_70 = arith.constant 0 : index
    %c0_71 = arith.constant 0 : index
    %150 = vector.load %arg3[%c1_69, %c0_70, %c0_71] : memref<2x1x32xf32, #tpu.memory_space<vmem>>, vector<1x1x32xf32>
    %151 = vector.shape_cast %150 : vector<1x1x32xf32> to vector<1x32xf32>
    %cst_72 = arith.constant dense<0.000000e+00> : vector<8xf32>
    %152 = vector.multi_reduction <add>, %147, %cst_72 [1] : vector<8x32xf32> to vector<8xf32>
    %153 = vector.shape_cast %152 : vector<8xf32> to vector<8x1xf32>
    %cst_73 = arith.constant 3.200000e+01 : f32
    %154 = vector.broadcast %cst_73 : f32 to vector<8x1xf32>
    %155 = arith.divf %153, %154 : vector<8x1xf32>
    %156 = vector.broadcast %155 : vector<8x1xf32> to vector<8x32xf32>
    %157 = arith.subf %147, %156 : vector<8x32xf32>
    %158 = arith.mulf %157, %157 : vector<8x32xf32>
    %cst_74 = arith.constant dense<0.000000e+00> : vector<8xf32>
    %159 = vector.multi_reduction <add>, %158, %cst_74 [1] : vector<8x32xf32> to vector<8xf32>
    %160 = vector.shape_cast %159 : vector<8xf32> to vector<8x1xf32>
    %cst_75 = arith.constant 3.200000e+01 : f32
    %161 = vector.broadcast %cst_75 : f32 to vector<8x1xf32>
    %162 = arith.divf %160, %161 : vector<8x1xf32>
    %cst_76 = arith.constant 9.99999974E-6 : f32
    %163 = vector.broadcast %cst_76 : f32 to vector<8x1xf32>
    %164 = arith.addf %162, %163 : vector<8x1xf32>
    %165 = math.rsqrt %164 : vector<8x1xf32>
    %166 = vector.broadcast %165 : vector<8x1xf32> to vector<8x32xf32>
    %167 = arith.mulf %157, %166 : vector<8x32xf32>
    %168 = vector.broadcast %149 : vector<1x32xf32> to vector<8x32xf32>
    %169 = arith.mulf %167, %168 : vector<8x32xf32>
    %170 = vector.broadcast %151 : vector<1x32xf32> to vector<8x32xf32>
    %171 = arith.addf %169, %170 : vector<8x32xf32>
    %172 = arith.truncf %171 : vector<8x32xf32> to vector<8x32xbf16>
    %c1_77 = arith.constant 1 : index
    %c0_78 = arith.constant 0 : index
    %c0_79 = arith.constant 0 : index
    %173 = vector.load %arg4[%c1_77, %c0_78, %c0_79] : memref<2x32x96xbf16, #tpu.memory_space<vmem>>, vector<1x32x96xbf16>
    %174 = vector.shape_cast %173 : vector<1x32x96xbf16> to vector<32x96xbf16>
    %cst_80 = arith.constant dense<0.000000e+00> : vector<8x96xf32>
    %175 = tpu.matmul %172, %174, %cst_80 {dimension_numbers = #tpu.dot_dimension_numbers<[1], [0], [0], [1], [0, 0, 1, 1], [], []>} : vector<8x32xbf16>, vector<32x96xbf16>, vector<8x96xf32> -> vector<8x96xf32>
    %c1_81 = arith.constant 1 : index
    %c0_82 = arith.constant 0 : index
    %c0_83 = arith.constant 0 : index
    %176 = vector.load %arg5[%c1_81, %c0_82, %c0_83] : memref<2x1x96xf32, #tpu.memory_space<vmem>>, vector<1x1x96xf32>
    %177 = vector.shape_cast %176 : vector<1x1x96xf32> to vector<1x96xf32>
    %178 = vector.broadcast %177 : vector<1x96xf32> to vector<8x96xf32>
    %179 = arith.addf %175, %178 : vector<8x96xf32>
    %180 = vector.extract_strided_slice %179 {offsets = [0, 0], sizes = [8, 16], strides = [1, 1]} : vector<8x96xf32> to vector<8x16xf32>
    %cst_84 = arith.constant 2.500000e-01 : f32
    %181 = vector.broadcast %cst_84 : f32 to vector<8x16xf32>
    %182 = arith.mulf %180, %181 : vector<8x16xf32>
    %183 = vector.extract_strided_slice %179 {offsets = [0, 32], sizes = [8, 16], strides = [1, 1]} : vector<8x96xf32> to vector<8x16xf32>
    %184 = vector.extract_strided_slice %179 {offsets = [0, 64], sizes = [8, 16], strides = [1, 1]} : vector<8x96xf32> to vector<8x16xf32>
    %185 = arith.truncf %182 : vector<8x16xf32> to vector<8x16xbf16>
    %186 = arith.truncf %183 : vector<8x16xf32> to vector<8x16xbf16>
    %cst_85 = arith.constant dense<0.000000e+00> : vector<8x8xf32>
    %187 = tpu.matmul %185, %186, %cst_85 {dimension_numbers = #tpu.dot_dimension_numbers<[1], [1], [0], [0], [0, 0, 1, 0], [], []>} : vector<8x16xbf16>, vector<8x16xbf16>, vector<8x8xf32> -> vector<8x8xf32>
    %188 = arith.addf %187, %7 : vector<8x8xf32>
    %cst_86 = arith.constant dense<0xFF800000> : vector<8xf32>
    %189 = vector.multi_reduction <maximumf>, %188, %cst_86 [1] : vector<8x8xf32> to vector<8xf32>
    %190 = vector.shape_cast %189 : vector<8xf32> to vector<8x1xf32>
    %191 = vector.broadcast %190 : vector<8x1xf32> to vector<8x8xf32>
    %192 = arith.subf %188, %191 : vector<8x8xf32>
    %193 = math.exp %192 : vector<8x8xf32>
    %cst_87 = arith.constant dense<0.000000e+00> : vector<8xf32>
    %194 = vector.multi_reduction <add>, %193, %cst_87 [1] : vector<8x8xf32> to vector<8xf32>
    %195 = vector.shape_cast %194 : vector<8xf32> to vector<8x1xf32>
    %196 = tpu.reciprocal %195 {approx = true} : vector<8x1xf32> -> vector<8x1xf32>
    %197 = vector.broadcast %196 : vector<8x1xf32> to vector<8x8xf32>
    %198 = arith.mulf %193, %197 : vector<8x8xf32>
    %199 = arith.truncf %198 : vector<8x8xf32> to vector<8x8xbf16>
    %200 = arith.truncf %184 : vector<8x16xf32> to vector<8x16xbf16>
    %cst_88 = arith.constant dense<0.000000e+00> : vector<8x16xf32>
    %201 = tpu.matmul %199, %200, %cst_88 {dimension_numbers = #tpu.dot_dimension_numbers<[1], [0], [0], [1], [0, 0, 1, 1], [], []>} : vector<8x8xbf16>, vector<8x16xbf16>, vector<8x16xf32> -> vector<8x16xf32>
    %202 = vector.extract_strided_slice %179 {offsets = [0, 16], sizes = [8, 16], strides = [1, 1]} : vector<8x96xf32> to vector<8x16xf32>
    %cst_89 = arith.constant 2.500000e-01 : f32
    %203 = vector.broadcast %cst_89 : f32 to vector<8x16xf32>
    %204 = arith.mulf %202, %203 : vector<8x16xf32>
    %205 = vector.extract_strided_slice %179 {offsets = [0, 48], sizes = [8, 16], strides = [1, 1]} : vector<8x96xf32> to vector<8x16xf32>
    %206 = vector.extract_strided_slice %179 {offsets = [0, 80], sizes = [8, 16], strides = [1, 1]} : vector<8x96xf32> to vector<8x16xf32>
    %207 = arith.truncf %204 : vector<8x16xf32> to vector<8x16xbf16>
    %208 = arith.truncf %205 : vector<8x16xf32> to vector<8x16xbf16>
    %cst_90 = arith.constant dense<0.000000e+00> : vector<8x8xf32>
    %209 = tpu.matmul %207, %208, %cst_90 {dimension_numbers = #tpu.dot_dimension_numbers<[1], [1], [0], [0], [0, 0, 1, 0], [], []>} : vector<8x16xbf16>, vector<8x16xbf16>, vector<8x8xf32> -> vector<8x8xf32>
    %210 = arith.addf %209, %7 : vector<8x8xf32>
    %cst_91 = arith.constant dense<0xFF800000> : vector<8xf32>
    %211 = vector.multi_reduction <maximumf>, %210, %cst_91 [1] : vector<8x8xf32> to vector<8xf32>
    %212 = vector.shape_cast %211 : vector<8xf32> to vector<8x1xf32>
    %213 = vector.broadcast %212 : vector<8x1xf32> to vector<8x8xf32>
    %214 = arith.subf %210, %213 : vector<8x8xf32>
    %215 = math.exp %214 : vector<8x8xf32>
    %cst_92 = arith.constant dense<0.000000e+00> : vector<8xf32>
    %216 = vector.multi_reduction <add>, %215, %cst_92 [1] : vector<8x8xf32> to vector<8xf32>
    %217 = vector.shape_cast %216 : vector<8xf32> to vector<8x1xf32>
    %218 = tpu.reciprocal %217 {approx = true} : vector<8x1xf32> -> vector<8x1xf32>
    %219 = vector.broadcast %218 : vector<8x1xf32> to vector<8x8xf32>
    %220 = arith.mulf %215, %219 : vector<8x8xf32>
    %221 = arith.truncf %220 : vector<8x8xf32> to vector<8x8xbf16>
    %222 = arith.truncf %206 : vector<8x16xf32> to vector<8x16xbf16>
    %cst_93 = arith.constant dense<0.000000e+00> : vector<8x16xf32>
    %223 = tpu.matmul %221, %222, %cst_93 {dimension_numbers = #tpu.dot_dimension_numbers<[1], [0], [0], [1], [0, 0, 1, 1], [], []>} : vector<8x8xbf16>, vector<8x16xbf16>, vector<8x16xf32> -> vector<8x16xf32>
    %224 = tpu.concatenate %201, %223 in 1 : vector<8x16xf32>, vector<8x16xf32> -> vector<8x32xf32>
    %225 = arith.truncf %224 : vector<8x32xf32> to vector<8x32xbf16>
    %c1_94 = arith.constant 1 : index
    %c0_95 = arith.constant 0 : index
    %c0_96 = arith.constant 0 : index
    %226 = vector.load %arg6[%c1_94, %c0_95, %c0_96] : memref<2x32x32xbf16, #tpu.memory_space<vmem>>, vector<1x32x32xbf16>
    %227 = vector.shape_cast %226 : vector<1x32x32xbf16> to vector<32x32xbf16>
    %cst_97 = arith.constant dense<0.000000e+00> : vector<8x32xf32>
    %228 = tpu.matmul %225, %227, %cst_97 {dimension_numbers = #tpu.dot_dimension_numbers<[1], [0], [0], [1], [0, 0, 1, 1], [], []>} : vector<8x32xbf16>, vector<32x32xbf16>, vector<8x32xf32> -> vector<8x32xf32>
    %c1_98 = arith.constant 1 : index
    %c0_99 = arith.constant 0 : index
    %c0_100 = arith.constant 0 : index
    %229 = vector.load %arg7[%c1_98, %c0_99, %c0_100] : memref<2x1x32xf32, #tpu.memory_space<vmem>>, vector<1x1x32xf32>
    %230 = vector.shape_cast %229 : vector<1x1x32xf32> to vector<1x32xf32>
    %231 = vector.broadcast %230 : vector<1x32xf32> to vector<8x32xf32>
    %232 = arith.addf %228, %231 : vector<8x32xf32>
    %233 = arith.addf %147, %232 : vector<8x32xf32>
    %c1_101 = arith.constant 1 : index
    %c0_102 = arith.constant 0 : index
    %c0_103 = arith.constant 0 : index
    %234 = vector.load %arg8[%c1_101, %c0_102, %c0_103] : memref<2x1x32xf32, #tpu.memory_space<vmem>>, vector<1x1x32xf32>
    %235 = vector.shape_cast %234 : vector<1x1x32xf32> to vector<1x32xf32>
    %c1_104 = arith.constant 1 : index
    %c0_105 = arith.constant 0 : index
    %c0_106 = arith.constant 0 : index
    %236 = vector.load %arg9[%c1_104, %c0_105, %c0_106] : memref<2x1x32xf32, #tpu.memory_space<vmem>>, vector<1x1x32xf32>
    %237 = vector.shape_cast %236 : vector<1x1x32xf32> to vector<1x32xf32>
    %cst_107 = arith.constant dense<0.000000e+00> : vector<8xf32>
    %238 = vector.multi_reduction <add>, %233, %cst_107 [1] : vector<8x32xf32> to vector<8xf32>
    %239 = vector.shape_cast %238 : vector<8xf32> to vector<8x1xf32>
    %cst_108 = arith.constant 3.200000e+01 : f32
    %240 = vector.broadcast %cst_108 : f32 to vector<8x1xf32>
    %241 = arith.divf %239, %240 : vector<8x1xf32>
    %242 = vector.broadcast %241 : vector<8x1xf32> to vector<8x32xf32>
    %243 = arith.subf %233, %242 : vector<8x32xf32>
    %244 = arith.mulf %243, %243 : vector<8x32xf32>
    %cst_109 = arith.constant dense<0.000000e+00> : vector<8xf32>
    %245 = vector.multi_reduction <add>, %244, %cst_109 [1] : vector<8x32xf32> to vector<8xf32>
    %246 = vector.shape_cast %245 : vector<8xf32> to vector<8x1xf32>
    %cst_110 = arith.constant 3.200000e+01 : f32
    %247 = vector.broadcast %cst_110 : f32 to vector<8x1xf32>
    %248 = arith.divf %246, %247 : vector<8x1xf32>
    %cst_111 = arith.constant 9.99999974E-6 : f32
    %249 = vector.broadcast %cst_111 : f32 to vector<8x1xf32>
    %250 = arith.addf %248, %249 : vector<8x1xf32>
    %251 = math.rsqrt %250 : vector<8x1xf32>
    %252 = vector.broadcast %251 : vector<8x1xf32> to vector<8x32xf32>
    %253 = arith.mulf %243, %252 : vector<8x32xf32>
    %254 = vector.broadcast %235 : vector<1x32xf32> to vector<8x32xf32>
    %255 = arith.mulf %253, %254 : vector<8x32xf32>
    %256 = vector.broadcast %237 : vector<1x32xf32> to vector<8x32xf32>
    %257 = arith.addf %255, %256 : vector<8x32xf32>
    %258 = arith.truncf %257 : vector<8x32xf32> to vector<8x32xbf16>
    %c1_112 = arith.constant 1 : index
    %c0_113 = arith.constant 0 : index
    %c0_114 = arith.constant 0 : index
    %259 = vector.load %arg10[%c1_112, %c0_113, %c0_114] : memref<2x32x128xbf16, #tpu.memory_space<vmem>>, vector<1x32x128xbf16>
    %260 = vector.shape_cast %259 : vector<1x32x128xbf16> to vector<32x128xbf16>
    %cst_115 = arith.constant dense<0.000000e+00> : vector<8x128xf32>
    %261 = tpu.matmul %258, %260, %cst_115 {dimension_numbers = #tpu.dot_dimension_numbers<[1], [0], [0], [1], [0, 0, 1, 1], [], []>} : vector<8x32xbf16>, vector<32x128xbf16>, vector<8x128xf32> -> vector<8x128xf32>
    %c1_116 = arith.constant 1 : index
    %c0_117 = arith.constant 0 : index
    %c0_118 = arith.constant 0 : index
    %262 = vector.load %arg11[%c1_116, %c0_117, %c0_118] : memref<2x1x128xf32, #tpu.memory_space<vmem>>, vector<1x1x128xf32>
    %263 = vector.shape_cast %262 : vector<1x1x128xf32> to vector<1x128xf32>
    %264 = vector.broadcast %263 : vector<1x128xf32> to vector<8x128xf32>
    %265 = arith.addf %261, %264 : vector<8x128xf32>
    %cst_119 = arith.constant 5.000000e-01 : f32
    %266 = vector.broadcast %cst_119 : f32 to vector<8x128xf32>
    %267 = arith.mulf %266, %265 : vector<8x128xf32>
    %cst_120 = arith.constant 4.471500e-02 : f32
    %268 = vector.broadcast %cst_120 : f32 to vector<8x128xf32>
    %269 = arith.mulf %268, %265 : vector<8x128xf32>
    %270 = arith.mulf %269, %265 : vector<8x128xf32>
    %271 = arith.mulf %270, %265 : vector<8x128xf32>
    %272 = arith.addf %265, %271 : vector<8x128xf32>
    %cst_121 = arith.constant 0.797884583 : f32
    %273 = vector.broadcast %cst_121 : f32 to vector<8x128xf32>
    %274 = arith.mulf %273, %272 : vector<8x128xf32>
    %275 = math.tanh %274 : vector<8x128xf32>
    %cst_122 = arith.constant 1.000000e+00 : f32
    %276 = vector.broadcast %cst_122 : f32 to vector<8x128xf32>
    %277 = arith.addf %276, %275 : vector<8x128xf32>
    %278 = arith.mulf %267, %277 : vector<8x128xf32>
    %279 = arith.truncf %278 : vector<8x128xf32> to vector<8x128xbf16>
    %c1_123 = arith.constant 1 : index
    %c0_124 = arith.constant 0 : index
    %c0_125 = arith.constant 0 : index
    %280 = vector.load %arg12[%c1_123, %c0_124, %c0_125] : memref<2x128x32xbf16, #tpu.memory_space<vmem>>, vector<1x128x32xbf16>
    %281 = vector.shape_cast %280 : vector<1x128x32xbf16> to vector<128x32xbf16>
    %cst_126 = arith.constant dense<0.000000e+00> : vector<8x32xf32>
    %282 = tpu.matmul %279, %281, %cst_126 {dimension_numbers = #tpu.dot_dimension_numbers<[1], [0], [0], [1], [0, 0, 1, 1], [], []>} : vector<8x128xbf16>, vector<128x32xbf16>, vector<8x32xf32> -> vector<8x32xf32>
    %283 = arith.addf %233, %282 : vector<8x32xf32>
    %c1_127 = arith.constant 1 : index
    %c0_128 = arith.constant 0 : index
    %c0_129 = arith.constant 0 : index
    %284 = vector.load %arg13[%c1_127, %c0_128, %c0_129] : memref<2x1x32xf32, #tpu.memory_space<vmem>>, vector<1x1x32xf32>
    %285 = vector.shape_cast %284 : vector<1x1x32xf32> to vector<1x32xf32>
    %286 = vector.broadcast %285 : vector<1x32xf32> to vector<8x32xf32>
    %287 = arith.addf %283, %286 : vector<8x32xf32>
    %c0_130 = arith.constant 0 : index
    %c0_131 = arith.constant 0 : index
    %288 = vector.load %arg14[%c0_130, %c0_131] : memref<1x32xf32, #tpu.memory_space<vmem>>, vector<1x32xf32>
    %c0_132 = arith.constant 0 : index
    %c0_133 = arith.constant 0 : index
    %289 = vector.load %arg15[%c0_132, %c0_133] : memref<1x32xf32, #tpu.memory_space<vmem>>, vector<1x32xf32>
    %cst_134 = arith.constant dense<0.000000e+00> : vector<8xf32>
    %290 = vector.multi_reduction <add>, %287, %cst_134 [1] : vector<8x32xf32> to vector<8xf32>
    %291 = vector.shape_cast %290 : vector<8xf32> to vector<8x1xf32>
    %cst_135 = arith.constant 3.200000e+01 : f32
    %292 = vector.broadcast %cst_135 : f32 to vector<8x1xf32>
    %293 = arith.divf %291, %292 : vector<8x1xf32>
    %294 = vector.broadcast %293 : vector<8x1xf32> to vector<8x32xf32>
    %295 = arith.subf %287, %294 : vector<8x32xf32>
    %296 = arith.mulf %295, %295 : vector<8x32xf32>
    %cst_136 = arith.constant dense<0.000000e+00> : vector<8xf32>
    %297 = vector.multi_reduction <add>, %296, %cst_136 [1] : vector<8x32xf32> to vector<8xf32>
    %298 = vector.shape_cast %297 : vector<8xf32> to vector<8x1xf32>
    %cst_137 = arith.constant 3.200000e+01 : f32
    %299 = vector.broadcast %cst_137 : f32 to vector<8x1xf32>
    %300 = arith.divf %298, %299 : vector<8x1xf32>
    %cst_138 = arith.constant 9.99999974E-6 : f32
    %301 = vector.broadcast %cst_138 : f32 to vector<8x1xf32>
    %302 = arith.addf %300, %301 : vector<8x1xf32>
    %303 = math.rsqrt %302 : vector<8x1xf32>
    %304 = vector.broadcast %303 : vector<8x1xf32> to vector<8x32xf32>
    %305 = arith.mulf %295, %304 : vector<8x32xf32>
    %306 = vector.broadcast %288 : vector<1x32xf32> to vector<8x32xf32>
    %307 = arith.mulf %305, %306 : vector<8x32xf32>
    %308 = vector.broadcast %289 : vector<1x32xf32> to vector<8x32xf32>
    %309 = arith.addf %307, %308 : vector<8x32xf32>
    %310 = arith.truncf %309 : vector<8x32xf32> to vector<8x32xbf16>
    %c0_139 = arith.constant 0 : index
    %c0_140 = arith.constant 0 : index
    %311 = vector.load %arg16[%c0_139, %c0_140] : memref<32x128xbf16, #tpu.memory_space<vmem>>, vector<32x128xbf16>
    %cst_141 = arith.constant dense<0.000000e+00> : vector<8x128xf32>
    %312 = tpu.matmul %310, %311, %cst_141 {dimension_numbers = #tpu.dot_dimension_numbers<[1], [0], [0], [1], [0, 0, 1, 1], [], []>} : vector<8x32xbf16>, vector<32x128xbf16>, vector<8x128xf32> -> vector<8x128xf32>
    %c0_142 = arith.constant 0 : index
    %c0_143 = arith.constant 0 : index
    %c0_144 = arith.constant 0 : index
    %313 = vector.load %arg17[%c0_142, %c0_143, %c0_144] : memref<1x8x128xf32, #tpu.memory_space<vmem>>, vector<1x8x128xf32>
    %314 = vector.shape_cast %313 : vector<1x8x128xf32> to vector<8x128xf32>
    %315 = vector.shape_cast %312 : vector<8x128xf32> to vector<1x8x128xf32>
    tpu.vector_store %arg17[%c0_142, %c0_143, %c0_144], %315 {strides = array<i32>} : memref<1x8x128xf32, #tpu.memory_space<vmem>>, vector<1x8x128xf32>,
    return
  }
  func.func @transform_0(%arg0: i32) -> (i32, i32, i32) {
    %c0_i32 = arith.constant 0 : i32
    %c0_i32_0 = arith.constant 0 : i32
    %c0_i32_1 = arith.constant 0 : i32
    return %arg0, %c0_i32, %c0_i32_0 : i32, i32, i32
  }
  func.func @transform_1(%arg0: i32) -> (i32, i32, i32) {
    %c0_i32 = arith.constant 0 : i32
    %c0_i32_0 = arith.constant 0 : i32
    %c0_i32_1 = arith.constant 0 : i32
    %c0_i32_2 = arith.constant 0 : i32
    return %c0_i32, %c0_i32_0, %c0_i32_1 : i32, i32, i32
  }
  func.func @transform_2(%arg0: i32) -> (i32, i32, i32) {
    %c0_i32 = arith.constant 0 : i32
    %c0_i32_0 = arith.constant 0 : i32
    %c0_i32_1 = arith.constant 0 : i32
    %c0_i32_2 = arith.constant 0 : i32
    return %c0_i32, %c0_i32_0, %c0_i32_1 : i32, i32, i32
  }
  func.func @transform_3(%arg0: i32) -> (i32, i32, i32) {
    %c0_i32 = arith.constant 0 : i32
    %c0_i32_0 = arith.constant 0 : i32
    %c0_i32_1 = arith.constant 0 : i32
    %c0_i32_2 = arith.constant 0 : i32
    return %c0_i32, %c0_i32_0, %c0_i32_1 : i32, i32, i32
  }
  func.func @transform_4(%arg0: i32) -> (i32, i32, i32) {
    %c0_i32 = arith.constant 0 : i32
    %c0_i32_0 = arith.constant 0 : i32
    %c0_i32_1 = arith.constant 0 : i32
    %c0_i32_2 = arith.constant 0 : i32
    return %c0_i32, %c0_i32_0, %c0_i32_1 : i32, i32, i32
  }
  func.func @transform_5(%arg0: i32) -> (i32, i32, i32) {
    %c0_i32 = arith.constant 0 : i32
    %c0_i32_0 = arith.constant 0 : i32
    %c0_i32_1 = arith.constant 0 : i32
    %c0_i32_2 = arith.constant 0 : i32
    return %c0_i32, %c0_i32_0, %c0_i32_1 : i32, i32, i32
  }
  func.func @transform_6(%arg0: i32) -> (i32, i32, i32) {
    %c0_i32 = arith.constant 0 : i32
    %c0_i32_0 = arith.constant 0 : i32
    %c0_i32_1 = arith.constant 0 : i32
    %c0_i32_2 = arith.constant 0 : i32
    return %c0_i32, %c0_i32_0, %c0_i32_1 : i32, i32, i32
  }
  func.func @transform_7(%arg0: i32) -> (i32, i32, i32) {
    %c0_i32 = arith.constant 0 : i32
    %c0_i32_0 = arith.constant 0 : i32
    %c0_i32_1 = arith.constant 0 : i32
    %c0_i32_2 = arith.constant 0 : i32
    return %c0_i32, %c0_i32_0, %c0_i32_1 : i32, i32, i32
  }
  func.func @transform_8(%arg0: i32) -> (i32, i32, i32) {
    %c0_i32 = arith.constant 0 : i32
    %c0_i32_0 = arith.constant 0 : i32
    %c0_i32_1 = arith.constant 0 : i32
    %c0_i32_2 = arith.constant 0 : i32
    return %c0_i32, %c0_i32_0, %c0_i32_1 : i32, i32, i32
  }
  func.func @transform_9(%arg0: i32) -> (i32, i32, i32) {
    %c0_i32 = arith.constant 0 : i32
    %c0_i32_0 = arith.constant 0 : i32
    %c0_i32_1 = arith.constant 0 : i32
    %c0_i32_2 = arith.constant 0 : i32
    return %c0_i32, %c0_i32_0, %c0_i32_1 : i32, i32, i32
  }
  func.func @transform_10(%arg0: i32) -> (i32, i32, i32) {
    %c0_i32 = arith.constant 0 : i32
    %c0_i32_0 = arith.constant 0 : i32
    %c0_i32_1 = arith.constant 0 : i32
    %c0_i32_2 = arith.constant 0 : i32
    return %c0_i32, %c0_i32_0, %c0_i32_1 : i32, i32, i32
  }
  func.func @transform_11(%arg0: i32) -> (i32, i32, i32) {
    %c0_i32 = arith.constant 0 : i32
    %c0_i32_0 = arith.constant 0 : i32
    %c0_i32_1 = arith.constant 0 : i32
    %c0_i32_2 = arith.constant 0 : i32
    return %c0_i32, %c0_i32_0, %c0_i32_1 : i32, i32, i32
  }
  func.func @transform_12(%arg0: i32) -> (i32, i32, i32) {
    %c0_i32 = arith.constant 0 : i32
    %c0_i32_0 = arith.constant 0 : i32
    %c0_i32_1 = arith.constant 0 : i32
    %c0_i32_2 = arith.constant 0 : i32
    return %c0_i32, %c0_i32_0, %c0_i32_1 : i32, i32, i32
  }
  func.func @transform_13(%arg0: i32) -> (i32, i32) {
    %c0_i32 = arith.constant 0 : i32
    %c0_i32_0 = arith.constant 0 : i32
    %c0_i32_1 = arith.constant 0 : i32
    return %c0_i32, %c0_i32_0 : i32, i32
  }
  func.func @transform_14(%arg0: i32) -> (i32, i32) {
    %c0_i32 = arith.constant 0 : i32
    %c0_i32_0 = arith.constant 0 : i32
    %c0_i32_1 = arith.constant 0 : i32
    return %c0_i32, %c0_i32_0 : i32, i32
  }
  func.func @transform_15(%arg0: i32) -> (i32, i32) {
    %c0_i32 = arith.constant 0 : i32
    %c0_i32_0 = arith.constant 0 : i32
    %c0_i32_1 = arith.constant 0 : i32
    return %c0_i32, %c0_i32_0 : i32, i32
  }
  func.func @transform_16(%arg0: i32) -> (i32, i32, i32) {
    %c0_i32 = arith.constant 0 : i32
    %c0_i32_0 = arith.constant 0 : i32
    %c0_i32_1 = arith.constant 0 : i32
    return %arg0, %c0_i32, %c0_i32_0 : i32, i32, i32
  }
}

</mosaic_0001>

<llo_original>
// kernel: _lambda_.1
$region0: #{_lambda_.1}
  #allocation0 [shape = 'u32[]', space=smem, size = 0x4, offset = 0x4, fixed_abs, tag = 'smem constant byte address 0x4 - core index']
  #allocation1 [shape = 'u32[144,128]{1,0:T(1,128)}', space=vmem, size = 0x12000, scoped, tag = 'internal scratch']
  %s0 = inlined_call_operand.vmem [shape: f32[2,8,32], index: 0, kind: input, shape index: {}]
  %s1 = inlined_call_operand.vmem [shape: f32[2,1,32], index: 1, kind: input, shape index: {}]
  %s2 = inlined_call_operand.vmem [shape: f32[2,1,32], index: 2, kind: input, shape index: {}]
  %s3 = inlined_call_operand.vmem [shape: bf16[2,32,96], index: 3, kind: input, shape index: {}]
  %s4 = inlined_call_operand.vmem [shape: f32[2,1,96], index: 4, kind: input, shape index: {}]
  %s5 = inlined_call_operand.vmem [shape: bf16[2,32,32], index: 5, kind: input, shape index: {}]
  %s6 = inlined_call_operand.vmem [shape: f32[2,1,32], index: 6, kind: input, shape index: {}]
  %s7 = inlined_call_operand.vmem [shape: f32[2,1,32], index: 7, kind: input, shape index: {}]
  %s8 = inlined_call_operand.vmem [shape: f32[2,1,32], index: 8, kind: input, shape index: {}]
  %s9 = inlined_call_operand.vmem [shape: bf16[2,32,128], index: 9, kind: input, shape index: {}]
  %s10 = inlined_call_operand.vmem [shape: f32[2,1,128], index: 10, kind: input, shape index: {}]
  %s11 = inlined_call_operand.vmem [shape: bf16[2,128,32], index: 11, kind: input, shape index: {}]
  %s12 = inlined_call_operand.vmem [shape: f32[2,1,32], index: 12, kind: input, shape index: {}]
  %s13 = inlined_call_operand.vmem [shape: f32[1,32], index: 13, kind: input, shape index: {}]
  %s14 = inlined_call_operand.vmem [shape: f32[1,32], index: 14, kind: input, shape index: {}]
  %s15 = inlined_call_operand.vmem [shape: bf16[32,128], index: 15, kind: input, shape index: {}]
  %s16 = inlined_call_operand.hbm [shape: f32[2,8,128], index: 16, kind: output, shape index: {}]
  %s17 = sld [smem:[#allocation0]]
  $region97: #{_lambda_.1} parent=0
    _
  %s19 = ssub.s32 1, %s17
  %s20 = scalar_select 0, %s19, %s17
  $region1: #{_lambda_.1} parent=0
    #allocation2 [shape = 'u8[8192]{0}', space=vmem, size = 0x2000, scoped, tag = 'output window, operand 0']
    #allocation3 [shape = 's32[2]{0}', space=sflag, size = 0x8, scoped, tag = 'scoped memory for _lambda_.1']
    %21 = vsyncpa [#allocation3], 0
    %s22 = scalar_lea.sflag [#allocation3], 1
    %23 = vsyncpa %s22, 0
    loop: start=0, step=1, limit=4
    $region2: #{_lambda_.1} parent=1 // loop_pre_header
      _
    $region3: #{_lambda_.1} parent=1 // loop_header
      %s25 = sphi 0, %s29
      %p26 = scmp.ge.s32.totalorder %s25, 4
      %s35 = sphi 0, %s37
      %s38 = sphi 0, %s35
      %s39 = sphi 0, %s38
      %s55 = sphi 0, %s39
      %s59 = sphi 0, %s59
      %s61 = sphi 0, %s59
      %s62 = sphi 0, %s61
      %s76 = sphi 0, %s62
      %s80 = sphi 0, %s80
      %s82 = sphi 0, %s80
      %s83 = sphi 0, %s82
      %s97 = sphi 0, %s83
      %s101 = sphi 0, %s101
      %s103 = sphi 0, %s101
      %s104 = sphi 0, %s103
      %s118 = sphi 0, %s104
      %s122 = sphi 0, %s122
      %s124 = sphi 0, %s122
      %s125 = sphi 0, %s124
      %s139 = sphi 0, %s125
      %s143 = sphi 0, %s143
      %s145 = sphi 0, %s143
      %s146 = sphi 0, %s145
      %s160 = sphi 0, %s146
      %s164 = sphi 0, %s164
      %s166 = sphi 0, %s164
      %s167 = sphi 0, %s166
      %s181 = sphi 0, %s167
      %s185 = sphi 0, %s185
      %s187 = sphi 0, %s185
      %s188 = sphi 0, %s187
      %s202 = sphi 0, %s188
      %s206 = sphi 0, %s206
      %s208 = sphi 0, %s206
      %s209 = sphi 0, %s208
      %s223 = sphi 0, %s209
      %s227 = sphi 0, %s227
      %s229 = sphi 0, %s227
      %s230 = sphi 0, %s229
      %s244 = sphi 0, %s230
      %s248 = sphi 0, %s248
      %s250 = sphi 0, %s248
      %s251 = sphi 0, %s250
      %s265 = sphi 0, %s251
      %s269 = sphi 0, %s269
      %s271 = sphi 0, %s269
      %s272 = sphi 0, %s271
      %s286 = sphi 0, %s272
      %s290 = sphi 0, %s290
      %s292 = sphi 0, %s290
      %s293 = sphi 0, %s292
      %s307 = sphi 0, %s293
      %s311 = sphi 0, %s311
      %s313 = sphi 0, %s311
      %s314 = sphi 0, %s313
      %s328 = sphi 0, %s314
      %s332 = sphi 0, %s332
      %s334 = sphi 0, %s332
      %s335 = sphi 0, %s334
      %s349 = sphi 0, %s335
      %s353 = sphi 0, %s353
      %s355 = sphi 0, %s353
      %s356 = sphi 0, %s355
      %s370 = sphi 0, %s356
      %s376 = sphi 0, %s378
      %s379 = sphi 0, %s376
      %s380 = sphi 0, %s379
      %s396 = sphi 0, %s380
    $region4: #{_lambda_.1} parent=1 // loop_header_branch
      %28 = sbr.rel (%p26) target = $region8
    $region5: #{_lambda_.1} parent=1 // loop_body
      %s30 = ssub.s32 %s25, 1
      %s31 = ssub.s32 %s25, 2
      %s32 = sadd.s32 %s25, 1
      %s33 = ssub.s32 %s25, %s32
      %p34 = scmp.eq.s32.totalorder %s33, 0
      %s36 = sadd.s32 %s35, 1
      %s37 = scalar_select %p34, %s35, %s36
      %p40 = pneg %p34
      %p41 = scmp.eq.s32.totalorder %s25, 1
      %p42 = por %p40, %p41
      %p43 = scmp.ne.s32.totalorder %s35, %s38
      %p44 = scmp.eq.s32.totalorder %s25, 0
      %p45 = por %p43, %p44
      %p46 = scmp.ne.s32.totalorder %s35, %s38
      %p47 = scmp.eq.s32.totalorder %s30, 1
      %p48 = por %p46, %p47
      %p49 = scmp.ne.s32.totalorder %s38, %s39
      %p50 = scmp.eq.s32.totalorder %s30, 0
      %p51 = por %p49, %p50
      %p52 = scmp.ne.s32.totalorder %s38, %s39
      %p53 = scmp.eq.s32.totalorder %s31, 1
      %p54 = por %p52, %p53
      %p56 = scmp.ne.s32.totalorder %s39, %s55
      %p57 = scmp.eq.s32.totalorder %s31, 0
      %p58 = por %p56, %p57
      %s60 = sadd.s32 %s59, 1
      %p63 = scmp.eq.s32.totalorder %s25, 1
      %p64 = scmp.ne.s32.totalorder %s59, %s61
      %p65 = scmp.eq.s32.totalorder %s25, 0
      %p66 = por %p64, %p65
      %p67 = scmp.ne.s32.totalorder %s59, %s61
      %p68 = scmp.eq.s32.totalorder %s30, 1
      %p69 = por %p67, %p68
      %p70 = scmp.ne.s32.totalorder %s61, %s62
      %p71 = scmp.eq.s32.totalorder %s30, 0
      %p72 = por %p70, %p71
      %p73 = scmp.ne.s32.totalorder %s61, %s62
      %p74 = scmp.eq.s32.totalorder %s31, 1
      %p75 = por %p73, %p74
      %p77 = scmp.ne.s32.totalorder %s62, %s76
      %p78 = scmp.eq.s32.totalorder %s31, 0
      %p79 = por %p77, %p78
      %s81 = sadd.s32 %s80, 1
      %p84 = scmp.eq.s32.totalorder %s25, 1
      %p85 = scmp.ne.s32.totalorder %s80, %s82
      %p86 = scmp.eq.s32.totalorder %s25, 0
      %p87 = por %p85, %p86
      %p88 = scmp.ne.s32.totalorder %s80, %s82
      %p89 = scmp.eq.s32.totalorder %s30, 1
      %p90 = por %p88, %p89
      %p91 = scmp.ne.s32.totalorder %s82, %s83
      %p92 = scmp.eq.s32.totalorder %s30, 0
      %p93 = por %p91, %p92
      %p94 = scmp.ne.s32.totalorder %s82, %s83
      %p95 = scmp.eq.s32.totalorder %s31, 1
      %p96 = por %p94, %p95
      %p98 = scmp.ne.s32.totalorder %s83, %s97
      %p99 = scmp.eq.s32.totalorder %s31, 0
      %p100 = por %p98, %p99
      %s102 = sadd.s32 %s101, 1
      %p105 = scmp.eq.s32.totalorder %s25, 1
      %p106 = scmp.ne.s32.totalorder %s101, %s103
      %p107 = scmp.eq.s32.totalorder %s25, 0
      %p108 = por %p106, %p107
      %p109 = scmp.ne.s32.totalorder %s101, %s103
      %p110 = scmp.eq.s32.totalorder %s30, 1
      %p111 = por %p109, %p110
      %p112 = scmp.ne.s32.totalorder %s103, %s104
      %p113 = scmp.eq.s32.totalorder %s30, 0
      %p114 = por %p112, %p113
      %p115 = scmp.ne.s32.totalorder %s103, %s104
      %p116 = scmp.eq.s32.totalorder %s31, 1
      %p117 = por %p115, %p116
      %p119 = scmp.ne.s32.totalorder %s104, %s118
      %p120 = scmp.eq.s32.totalorder %s31, 0
      %p121 = por %p119, %p120
      %s123 = sadd.s32 %s122, 1
      %p126 = scmp.eq.s32.totalorder %s25, 1
      %p127 = scmp.ne.s32.totalorder %s122, %s124
      %p128 = scmp.eq.s32.totalorder %s25, 0
      %p129 = por %p127, %p128
      %p130 = scmp.ne.s32.totalorder %s122, %s124
      %p131 = scmp.eq.s32.totalorder %s30, 1
      %p132 = por %p130, %p131
      %p133 = scmp.ne.s32.totalorder %s124, %s125
      %p134 = scmp.eq.s32.totalorder %s30, 0
      %p135 = por %p133, %p134
      %p136 = scmp.ne.s32.totalorder %s124, %s125
      %p137 = scmp.eq.s32.totalorder %s31, 1
      %p138 = por %p136, %p137
      %p140 = scmp.ne.s32.totalorder %s125, %s139
      %p141 = scmp.eq.s32.totalorder %s31, 0
      %p142 = por %p140, %p141
      %s144 = sadd.s32 %s143, 1
      %p147 = scmp.eq.s32.totalorder %s25, 1
      %p148 = scmp.ne.s32.totalorder %s143, %s145
      %p149 = scmp.eq.s32.totalorder %s25, 0
      %p150 = por %p148, %p149
      %p151 = scmp.ne.s32.totalorder %s143, %s145
      %p152 = scmp.eq.s32.totalorder %s30, 1
      %p153 = por %p151, %p152
      %p154 = scmp.ne.s32.totalorder %s145, %s146
      %p155 = scmp.eq.s32.totalorder %s30, 0
      %p156 = por %p154, %p155
      %p157 = scmp.ne.s32.totalorder %s145, %s146
      %p158 = scmp.eq.s32.totalorder %s31, 1
      %p159 = por %p157, %p158
      %p161 = scmp.ne.s32.totalorder %s146, %s160
      %p162 = scmp.eq.s32.totalorder %s31, 0
      %p163 = por %p161, %p162
      %s165 = sadd.s32 %s164, 1
      %p168 = scmp.eq.s32.totalorder %s25, 1
      %p169 = scmp.ne.s32.totalorder %s164, %s166
      %p170 = scmp.eq.s32.totalorder %s25, 0
      %p171 = por %p169, %p170
      %p172 = scmp.ne.s32.totalorder %s164, %s166
      %p173 = scmp.eq.s32.totalorder %s30, 1
      %p174 = por %p172, %p173
      %p175 = scmp.ne.s32.totalorder %s166, %s167
      %p176 = scmp.eq.s32.totalorder %s30, 0
      %p177 = por %p175, %p176
      %p178 = scmp.ne.s32.totalorder %s166, %s167
      %p179 = scmp.eq.s32.totalorder %s31, 1
      %p180 = por %p178, %p179
      %p182 = scmp.ne.s32.totalorder %s167, %s181
      %p183 = scmp.eq.s32.totalorder %s31, 0
      %p184 = por %p182, %p183
      %s186 = sadd.s32 %s185, 1
      %p189 = scmp.eq.s32.totalorder %s25, 1
      %p190 = scmp.ne.s32.totalorder %s185, %s187
      %p191 = scmp.eq.s32.totalorder %s25, 0
      %p192 = por %p190, %p191
      %p193 = scmp.ne.s32.totalorder %s185, %s187
      %p194 = scmp.eq.s32.totalorder %s30, 1
      %p195 = por %p193, %p194
      %p196 = scmp.ne.s32.totalorder %s187, %s188
      %p197 = scmp.eq.s32.totalorder %s30, 0
      %p198 = por %p196, %p197
      %p199 = scmp.ne.s32.totalorder %s187, %s188
      %p200 = scmp.eq.s32.totalorder %s31, 1
      %p201 = por %p199, %p200
      %p203 = scmp.ne.s32.totalorder %s188, %s202
      %p204 = scmp.eq.s32.totalorder %s31, 0
      %p205 = por %p203, %p204
      %s207 = sadd.s32 %s206, 1
      %p210 = scmp.eq.s32.totalorder %s25, 1
      %p211 = scmp.ne.s32.totalorder %s206, %s208
      %p212 = scmp.eq.s32.totalorder %s25, 0
      %p213 = por %p211, %p212
      %p214 = scmp.ne.s32.totalorder %s206, %s208
      %p215 = scmp.eq.s32.totalorder %s30, 1
      %p216 = por %p214, %p215
      %p217 = scmp.ne.s32.totalorder %s208, %s209
      %p218 = scmp.eq.s32.totalorder %s30, 0
      %p219 = por %p217, %p218
      %p220 = scmp.ne.s32.totalorder %s208, %s209
      %p221 = scmp.eq.s32.totalorder %s31, 1
      %p222 = por %p220, %p221
      %p224 = scmp.ne.s32.totalorder %s209, %s223
      %p225 = scmp.eq.s32.totalorder %s31, 0
      %p226 = por %p224, %p225
      %s228 = sadd.s32 %s227, 1
      %p231 = scmp.eq.s32.totalorder %s25, 1
      %p232 = scmp.ne.s32.totalorder %s227, %s229
      %p233 = scmp.eq.s32.totalorder %s25, 0
      %p234 = por %p232, %p233
      %p235 = scmp.ne.s32.totalorder %s227, %s229
      %p236 = scmp.eq.s32.totalorder %s30, 1
      %p237 = por %p235, %p236
      %p238 = scmp.ne.s32.totalorder %s229, %s230
      %p239 = scmp.eq.s32.totalorder %s30, 0
      %p240 = por %p238, %p239
      %p241 = scmp.ne.s32.totalorder %s229, %s230
      %p242 = scmp.eq.s32.totalorder %s31, 1
      %p243 = por %p241, %p242
      %p245 = scmp.ne.s32.totalorder %s230, %s244
      %p246 = scmp.eq.s32.totalorder %s31, 0
      %p247 = por %p245, %p246
      %s249 = sadd.s32 %s248, 1
      %p252 = scmp.eq.s32.totalorder %s25, 1
      %p253 = scmp.ne.s32.totalorder %s248, %s250
      %p254 = scmp.eq.s32.totalorder %s25, 0
      %p255 = por %p253, %p254
      %p256 = scmp.ne.s32.totalorder %s248, %s250
      %p257 = scmp.eq.s32.totalorder %s30, 1
      %p258 = por %p256, %p257
      %p259 = scmp.ne.s32.totalorder %s250, %s251
      %p260 = scmp.eq.s32.totalorder %s30, 0
      %p261 = por %p259, %p260
      %p262 = scmp.ne.s32.totalorder %s250, %s251
      %p263 = scmp.eq.s32.totalorder %s31, 1
      %p264 = por %p262, %p263
      %p266 = scmp.ne.s32.totalorder %s251, %s265
      %p267 = scmp.eq.s32.totalorder %s31, 0
      %p268 = por %p266, %p267
      %s270 = sadd.s32 %s269, 1
      %p273 = scmp.eq.s32.totalorder %s25, 1
      %p274 = scmp.ne.s32.totalorder %s269, %s271
      %p275 = scmp.eq.s32.totalorder %s25, 0
      %p276 = por %p274, %p275
      %p277 = scmp.ne.s32.totalorder %s269, %s271
      %p278 = scmp.eq.s32.totalorder %s30, 1
      %p279 = por %p277, %p278
      %p280 = scmp.ne.s32.totalorder %s271, %s272
      %p281 = scmp.eq.s32.totalorder %s30, 0
      %p282 = por %p280, %p281
      %p283 = scmp.ne.s32.totalorder %s271, %s272
      %p284 = scmp.eq.s32.totalorder %s31, 1
      %p285 = por %p283, %p284
      %p287 = scmp.ne.s32.totalorder %s272, %s286
      %p288 = scmp.eq.s32.totalorder %s31, 0
      %p289 = por %p287, %p288
      %s291 = sadd.s32 %s290, 1
      %p294 = scmp.eq.s32.totalorder %s25, 1
      %p295 = scmp.ne.s32.totalorder %s290, %s292
      %p296 = scmp.eq.s32.totalorder %s25, 0
      %p297 = por %p295, %p296
      %p298 = scmp.ne.s32.totalorder %s290, %s292
      %p299 = scmp.eq.s32.totalorder %s30, 1
      %p300 = por %p298, %p299
      %p301 = scmp.ne.s32.totalorder %s292, %s293
      %p302 = scmp.eq.s32.totalorder %s30, 0
      %p303 = por %p301, %p302
      %p304 = scmp.ne.s32.totalorder %s292, %s293
      %p305 = scmp.eq.s32.totalorder %s31, 1
      %p306 = por %p304, %p305
      %p308 = scmp.ne.s32.totalorder %s293, %s307
      %p309 = scmp.eq.s32.totalorder %s31, 0
      %p310 = por %p308, %p309
      %s312 = sadd.s32 %s311, 1
      %p315 = scmp.eq.s32.totalorder %s25, 1
      %p316 = scmp.ne.s32.totalorder %s311, %s313
      %p317 = scmp.eq.s32.totalorder %s25, 0
      %p318 = por %p316, %p317
      %p319 = scmp.ne.s32.totalorder %s311, %s313
      %p320 = scmp.eq.s32.totalorder %s30, 1
      %p321 = por %p319, %p320
      %p322 = scmp.ne.s32.totalorder %s313, %s314
      %p323 = scmp.eq.s32.totalorder %s30, 0
      %p324 = por %p322, %p323
      %p325 = scmp.ne.s32.totalorder %s313, %s314
      %p326 = scmp.eq.s32.totalorder %s31, 1
      %p327 = por %p325, %p326
      %p329 = scmp.ne.s32.totalorder %s314, %s328
      %p330 = scmp.eq.s32.totalorder %s31, 0
      %p331 = por %p329, %p330
      %s333 = sadd.s32 %s332, 1
      %p336 = scmp.eq.s32.totalorder %s25, 1
      %p337 = scmp.ne.s32.totalorder %s332, %s334
      %p338 = scmp.eq.s32.totalorder %s25, 0
      %p339 = por %p337, %p338
      %p340 = scmp.ne.s32.totalorder %s332, %s334
      %p341 = scmp.eq.s32.totalorder %s30, 1
      %p342 = por %p340, %p341
      %p343 = scmp.ne.s32.totalorder %s334, %s335
      %p344 = scmp.eq.s32.totalorder %s30, 0
      %p345 = por %p343, %p344
      %p346 = scmp.ne.s32.totalorder %s334, %s335
      %p347 = scmp.eq.s32.totalorder %s31, 1
      %p348 = por %p346, %p347
      %p350 = scmp.ne.s32.totalorder %s335, %s349
      %p351 = scmp.eq.s32.totalorder %s31, 0
      %p352 = por %p350, %p351
      %s354 = sadd.s32 %s353, 1
      %p357 = scmp.eq.s32.totalorder %s25, 1
      %p358 = scmp.ne.s32.totalorder %s353, %s355
      %p359 = scmp.eq.s32.totalorder %s25, 0
      %p360 = por %p358, %p359
      %p361 = scmp.ne.s32.totalorder %s353, %s355
      %p362 = scmp.eq.s32.totalorder %s30, 1
      %p363 = por %p361, %p362
      %p364 = scmp.ne.s32.totalorder %s355, %s356
      %p365 = scmp.eq.s32.totalorder %s30, 0
      %p366 = por %p364, %p365
      %p367 = scmp.ne.s32.totalorder %s355, %s356
      %p368 = scmp.eq.s32.totalorder %s31, 1
      %p369 = por %p367, %p368
      %p371 = scmp.ne.s32.totalorder %s356, %s370
      %p372 = scmp.eq.s32.totalorder %s31, 0
      %p373 = por %p371, %p372
      %s374 = ssub.s32 %s25, %s32
      %p375 = scmp.eq.s32.totalorder %s374, 0
      %s377 = sadd.s32 %s376, 1
      %s378 = scalar_select %p375, %s376, %s377
      %p381 = pneg %p375
      %p382 = scmp.eq.s32.totalorder %s25, 1
      %p383 = por %p381, %p382
      %p384 = scmp.ne.s32.totalorder %s376, %s379
      %p385 = scmp.eq.s32.totalorder %s25, 0
      %p386 = por %p384, %p385
      %p387 = scmp.ne.s32.totalorder %s376, %s379
      %p388 = scmp.eq.s32.totalorder %s30, 1
      %p389 = por %p387, %p388
      %p390 = scmp.ne.s32.totalorder %s379, %s380
      %p391 = scmp.eq.s32.totalorder %s30, 0
      %p392 = por %p390, %p391
      %p393 = scmp.ne.s32.totalorder %s379, %s380
      %p394 = scmp.eq.s32.totalorder %s31, 1
      %p395 = por %p393, %p394
      %p397 = scmp.ne.s32.totalorder %s380, %s396
      %p398 = scmp.eq.s32.totalorder %s31, 0
      %p399 = por %p397, %p398
      %p400 = scmp.le.s32.totalorder 1, %s25
      %p401 = scmp.lt.s32.totalorder %s25, 3
      %p402 = pnand %p400, %p401
      %p403 = pneg %p402
      // Predicated region
      $region9: #{_lambda_.1} parent=5 // pred_check
        _
      $region10: #{_lambda_.1} parent=5 // pred_check_branch
        %405 = sbr.rel (%p402) target = $region12
      $region11: #{_lambda_.1} parent=5 // pred_region
        %s406 = ssub.s32 %s25, 1
        // Predicated region
        $region13: #{_lambda_.1} parent=11 // pred_check
          %p407 = pneg %p72
        $region14: #{_lambda_.1} parent=11 // pred_check_branch
          %409 = sbr.rel (%p407) target = $region16
        $region15: #{_lambda_.1} parent=11 // pred_region
          _
        $region16: #{_lambda_.1} parent=11 // pred_fallthru
          _
        // Predicated region
        $region17: #{_lambda_.1} parent=11 // pred_check
          %p410 = pneg %p93
        $region18: #{_lambda_.1} parent=11 // pred_check_branch
          %412 = sbr.rel (%p410) target = $region20
        $region19: #{_lambda_.1} parent=11 // pred_region
          _
        $region20: #{_lambda_.1} parent=11 // pred_fallthru
          _
        // Predicated region
        $region21: #{_lambda_.1} parent=11 // pred_check
          %p413 = pneg %p114
        $region22: #{_lambda_.1} parent=11 // pred_check_branch
          %415 = sbr.rel (%p413) target = $region24
        $region23: #{_lambda_.1} parent=11 // pred_region
          _
        $region24: #{_lambda_.1} parent=11 // pred_fallthru
          _
        // Predicated region
        $region25: #{_lambda_.1} parent=11 // pred_check
          %p416 = pneg %p135
        $region26: #{_lambda_.1} parent=11 // pred_check_branch
          %418 = sbr.rel (%p416) target = $region28
        $region27: #{_lambda_.1} parent=11 // pred_region
          _
        $region28: #{_lambda_.1} parent=11 // pred_fallthru
          _
        // Predicated region
        $region29: #{_lambda_.1} parent=11 // pred_check
          %p419 = pneg %p156
        $region30: #{_lambda_.1} parent=11 // pred_check_branch
          %421 = sbr.rel (%p419) target = $region32
        $region31: #{_lambda_.1} parent=11 // pred_region
          _
        $region32: #{_lambda_.1} parent=11 // pred_fallthru
          _
        // Predicated region
        $region33: #{_lambda_.1} parent=11 // pred_check
          %p422 = pneg %p177
        $region34: #{_lambda_.1} parent=11 // pred_check_branch
          %424 = sbr.rel (%p422) target = $region36
        $region35: #{_lambda_.1} parent=11 // pred_region
          _
        $region36: #{_lambda_.1} parent=11 // pred_fallthru
          _
        // Predicated region
        $region37: #{_lambda_.1} parent=11 // pred_check
          %p425 = pneg %p198
        $region38: #{_lambda_.1} parent=11 // pred_check_branch
          %427 = sbr.rel (%p425) target = $region40
        $region39: #{_lambda_.1} parent=11 // pred_region
          _
        $region40: #{_lambda_.1} parent=11 // pred_fallthru
          _
        // Predicated region
        $region41: #{_lambda_.1} parent=11 // pred_check
          %p428 = pneg %p219
        $region42: #{_lambda_.1} parent=11 // pred_check_branch
          %430 = sbr.rel (%p428) target = $region44
        $region43: #{_lambda_.1} parent=11 // pred_region
          _
        $region44: #{_lambda_.1} parent=11 // pred_fallthru
          _
        // Predicated region
        $region45: #{_lambda_.1} parent=11 // pred_check
          %p431 = pneg %p240
        $region46: #{_lambda_.1} parent=11 // pred_check_branch
          %433 = sbr.rel (%p431) target = $region48
        $region47: #{_lambda_.1} parent=11 // pred_region
          _
        $region48: #{_lambda_.1} parent=11 // pred_fallthru
          _
        // Predicated region
        $region49: #{_lambda_.1} parent=11 // pred_check
          %p434 = pneg %p261
        $region50: #{_lambda_.1} parent=11 // pred_check_branch
          %436 = sbr.rel (%p434) target = $region52
        $region51: #{_lambda_.1} parent=11 // pred_region
          _
        $region52: #{_lambda_.1} parent=11 // pred_fallthru
          _
        // Predicated region
        $region53: #{_lambda_.1} parent=11 // pred_check
          %p437 = pneg %p282
        $region54: #{_lambda_.1} parent=11 // pred_check_branch
          %439 = sbr.rel (%p437) target = $region56
        $region55: #{_lambda_.1} parent=11 // pred_region
          _
        $region56: #{_lambda_.1} parent=11 // pred_fallthru
          _
        // Predicated region
        $region57: #{_lambda_.1} parent=11 // pred_check
          %p440 = pneg %p303
        $region58: #{_lambda_.1} parent=11 // pred_check_branch
          %442 = sbr.rel (%p440) target = $region60
        $region59: #{_lambda_.1} parent=11 // pred_region
          _
        $region60: #{_lambda_.1} parent=11 // pred_fallthru
          _
        // Predicated region
        $region61: #{_lambda_.1} parent=11 // pred_check
          %p443 = pneg %p324
        $region62: #{_lambda_.1} parent=11 // pred_check_branch
          %445 = sbr.rel (%p443) target = $region64
        $region63: #{_lambda_.1} parent=11 // pred_region
          _
        $region64: #{_lambda_.1} parent=11 // pred_fallthru
          _
        // Predicated region
        $region65: #{_lambda_.1} parent=11 // pred_check
          %p446 = pneg %p345
        $region66: #{_lambda_.1} parent=11 // pred_check_branch
          %448 = sbr.rel (%p446) target = $region68
        $region67: #{_lambda_.1} parent=11 // pred_region
          _
        $region68: #{_lambda_.1} parent=11 // pred_fallthru
          _
        // Predicated region
        $region69: #{_lambda_.1} parent=11 // pred_check
          %p449 = pneg %p366
        $region70: #{_lambda_.1} parent=11 // pred_check_branch
          %451 = sbr.rel (%p449) target = $region72
        $region71: #{_lambda_.1} parent=11 // pred_region
          _
        $region72: #{_lambda_.1} parent=11 // pred_fallthru
          _
      $region12: #{_lambda_.1} parent=5 // pred_fallthru
        _
      %p452 = scmp.lt.s32.totalorder %s25, 2
      // Predicated region
      $region73: #{_lambda_.1} parent=5 // pred_check
        %p453 = pneg %p452
      $region74: #{_lambda_.1} parent=5 // pred_check_branch
        %455 = sbr.rel (%p453) target = $region76
      $region75: #{_lambda_.1} parent=5 // pred_region
        // Predicated region
        $region77: #{_lambda_.1} parent=75 // pred_check
          %p456 = pneg %p45
        $region78: #{_lambda_.1} parent=75 // pred_check_branch
          %458 = sbr.rel (%p456) target = $region80
        $region79: #{_lambda_.1} parent=75 // pred_region
          %p459 = scmp.lt.s32.totalorder %s25, 1
          %s460 = scalar_select %p459, %s25, 1
          %s461 = smul.addr %s460, 8
          %s462 = scalar_lea.vmem %s0, %s461
        $region80: #{_lambda_.1} parent=75 // pred_fallthru
          _
      $region76: #{_lambda_.1} parent=5 // pred_fallthru
        _
      %p463 = scmp.le.s32.totalorder 1, %s25
      %p464 = scmp.lt.s32.totalorder %s25, 3
      %p465 = pnand %p463, %p464
      %p466 = pneg %p465
      // Predicated region
      $region81: #{_lambda_.1} parent=5 // pred_check
        _
      $region82: #{_lambda_.1} parent=5 // pred_check_branch
        %468 = sbr.rel (%p465) target = $region84
      $region83: #{_lambda_.1} parent=5 // pred_region
        %s469 = ssub.s32 %s25, 1
        %p470 = scmp.lt.s32.totalorder %s30, 1
        %s471 = scalar_select %p470, %s30, 1
        %s472 = smul.addr %s471, 8
        %s473 = scalar_lea.vmem %s0, %s472
        %p474 = pneg %p51
        %p475 = pneg %p48
        %p476 = pneg %p72
        %p477 = pneg %p69
        %p478 = pneg %p93
        %p479 = pneg %p90
        %p480 = pneg %p114
        %p481 = pneg %p111
        %p482 = pneg %p135
        %p483 = pneg %p132
        %p484 = pneg %p156
        %p485 = pneg %p153
        %p486 = pneg %p177
        %p487 = pneg %p174
        %p488 = pneg %p198
        %p489 = pneg %p195
        %p490 = pneg %p219
        %p491 = pneg %p216
        %p492 = pneg %p240
        %p493 = pneg %p237
        %p494 = pneg %p261
        %p495 = pneg %p258
        %p496 = pneg %p282
        %p497 = pneg %p279
        %p498 = pneg %p303
        %p499 = pneg %p300
        %p500 = pneg %p324
        %p501 = pneg %p321
        %p502 = pneg %p345
        %p503 = pneg %p342
        %p504 = pneg %p366
        %p505 = pneg %p363
        %p506 = pneg %p392
        %p507 = pneg %p389
        %s508 = sand.u32 %s379, 1
        %s509 = scalar_lea.sflag [#allocation3], %s508
        %s510 = sand.u32 %s379, 1
        %s511 = smul.addr %s510, 8
        %s512 = scalar_lea.vmem [#allocation2], %s511
        %p513 = scmp.lt.s32.totalorder %s30, 1
        %s514 = scalar_select %p513, %s30, 1
        %s515 = smul.addr %s514, 8
        %s516 = scalar_lea.vmem %s0, %s515
        %v518 = vld [vmem:[%s516] sm:$0xff]
        %v519 = vlaneseq
        %v520 = vshrl.u32 %v519, 7
        %v521 = vlaneseq
        %v522 = vand.u32 %v521, 127
        %vm523 = vcmp.le.s32.totalorder %v522, %v520
        %v524 = vsel %vm523, 0.0, -1e+30
        %v525 = vld [vmem:[%s1] sm:$0x1]
        %v526 = vld [vmem:[%s2] sm:$0x1]
        %vm527 = vcmask 261120
        %v528 = vsel %vm527, %v518, 0.0
        %529 = vadd.xlane.f32.xlu0 %v528
        %v530 = vpop.xlane.xlu0 %529
        %v531 = vrcp.pop 32.0
        %v532 = vmul.f32 %v530, %v531
        %v533 = vsub.f32 %v518, %v532
        %v534 = vmul.f32 %v533, %v533
        %v535 = vsel %vm527, %v534, 0.0
        %536 = vadd.xlane.f32.xlu0 %v535
        %v537 = vpop.xlane.xlu0 %536
        %v538 = vmul.f32 %v537, %v531
        %v539 = vadd.f32 %v538, 1e-05
        %v540 = vrsqrt.pop %v539
        %v541 = vmul.f32 %v533, %v540
        %v543 = vlaneseq
        %v544 = vshrl.u32 %v543, 7
        %v545 = vsub.s32 0, %v544
        %v546 = vrot.slane %v525, %v545
        %v548 = vmul.f32 %v541, %v546
        %v550 = vlaneseq
        %v551 = vshrl.u32 %v550, 7
        %v552 = vsub.s32 0, %v551
        %v553 = vrot.slane %v526, %v552
        %v555 = vadd.f32 %v548, %v553
        %v556 = vpack.c.bf16 %v555, %v555
        %v557 = vld [vmem:[%s3] sm:$0xf]
        %v558 = vld [vmem:[%s3 + $0x4] sm:$0xf]
        %v559 = vld [vmem:[%s3 + $0x8] sm:$0xf]
        %v560 = vld [vmem:[%s3 + $0xc] sm:$0xf]
        %v561 = vld [vmem:[%s4] sm:$0x1]
        %v563 = vlaneseq
        %v564 = vshrl.u32 %v563, 7
        %v565 = vsub.s32 0, %v564
        %v566 = vrot.slane %v561, %v565
        %v572 = vunpack.c.l.b16 %v557
        %v573 = vunpack.c.l.b16 %v558
        %v574 = vunpack.c.l.b16 %v559
        %v575 = vunpack.c.l.b16 %v560
        %v576 = vpack.c.b16 %v573, %v572
        %v577 = vpack.c.b16 %v575, %v574
        %v581 = vsel %vm527, %v556, 0
        %583 = vmatprep.subr.bf16.mxu0 0
        %584 = vmatpush1.bf16.msra.mxu0 %v576
        %585 = vmatprep.subr.bf16.mxu0 0
        %586 = vmatpush1.bf16.msra.mxu0 %v577
        %587 = vmatprep.subr.bf16.mxu0 0
        %588 = vmatpush1.bf16.msra.mxu0 0
        %589 = vmatprep.subr.bf16.mxu0 0
        %590 = vmatpush1.bf16.msra.mxu0 0
        %591 = vmatprep.subr.bf16.mxu0 0
        %592 = vmatpush1.bf16.msra.mxu0 0
        %593 = vmatprep.subr.bf16.mxu0 0
        %594 = vmatpush1.bf16.msra.mxu0 0
        %595 = vmatprep.subr.bf16.mxu0 0
        %596 = vmatpush1.bf16.msra.mxu0 0
        %597 = vmatprep.subr.bf16.mxu0 0
        %598 = vmatpush1.bf16.msra.mxu0 0
        %599 = vmatprep.subr.bf16.mxu0 0
        %600 = vmatpush1.bf16.msra.mxu0 0
        %601 = vmatprep.subr.bf16.mxu0 0
        %602 = vmatpush1.bf16.msra.mxu0 0
        %603 = vmatprep.subr.bf16.mxu0 0
        %604 = vmatpush1.bf16.msra.mxu0 0
        %605 = vmatprep.subr.bf16.mxu0 0
        %606 = vmatpush1.bf16.msra.mxu0 0
        %607 = vmatprep.subr.bf16.mxu0 0
        %608 = vmatpush1.bf16.msra.mxu0 0
        %609 = vmatprep.subr.bf16.mxu0 0
        %610 = vmatpush1.bf16.msra.mxu0 0
        %611 = vmatprep.subr.bf16.mxu0 0
        %612 = vmatpush1.bf16.msra.mxu0 0
        %613 = vmatprep.subr.bf16.mxu0 0
        %614 = vmatpush1.bf16.msra.mxu0 0
        %615 = vmatprep.mubr.bf16.mxu0 0
        %616 = vmatmul.mubr.bf16.gmra.mrb[0].mxu0 %v581
        %v617 = vpop.f32.mrb[0].mxu0
        %v618 = vadd.f32 %v566, %v617
        %v619 = vpop.f32.mrb[0].mxu0
        %v620 = vpop.f32.mrb[0].mxu0
        %v621 = vpop.f32.mrb[0].mxu0
        %622 = vdwg.mxu0
        %v623 = vmul.f32 %v618, 0.25
        %v624 = vpack.c.bf16 %v623, %v623
        %v625 = vpack.c.bf16 %v618, %v618
        %627 = vrot.lane.b32.xlu0 %v625, 96
        %v628 = vpop.permute.xlu0 %627
        %vm629 = vcmask 130048
        %v631 = vsel %vm629, %v624, 0
        %v634 = vsel %vm629, %v628, 0
        %636 = vmatprep.subr.bf16.mxu0 0
        %637 = vmatpush1.bf16.xpose.msra.mxu0 %v634
        %638 = vmatprep.subr.bf16.mxu0 0
        %639 = vmatpush1.bf16.xpose.msra.mxu0 0
        %640 = vmatprep.subr.bf16.mxu0 0
        %641 = vmatpush1.bf16.xpose.msra.mxu0 0
        %642 = vmatprep.subr.bf16.mxu0 0
        %643 = vmatpush1.bf16.xpose.msra.mxu0 0
        %644 = vmatprep.subr.bf16.mxu0 0
        %645 = vmatpush1.bf16.xpose.msra.mxu0 0
        %646 = vmatprep.subr.bf16.mxu0 0
        %647 = vmatpush1.bf16.xpose.msra.mxu0 0
        %648 = vmatprep.subr.bf16.mxu0 0
        %649 = vmatpush1.bf16.xpose.msra.mxu0 0
        %650 = vmatprep.subr.bf16.mxu0 0
        %651 = vmatpush1.bf16.xpose.msra.mxu0 0
        %652 = vmatprep.subr.bf16.mxu0 0
        %653 = vmatpush1.bf16.xpose.msra.mxu0 0
        %654 = vmatprep.subr.bf16.mxu0 0
        %655 = vmatpush1.bf16.xpose.msra.mxu0 0
        %656 = vmatprep.subr.bf16.mxu0 0
        %657 = vmatpush1.bf16.xpose.msra.mxu0 0
        %658 = vmatprep.subr.bf16.mxu0 0
        %659 = vmatpush1.bf16.xpose.msra.mxu0 0
        %660 = vmatprep.subr.bf16.mxu0 0
        %661 = vmatpush1.bf16.xpose.msra.mxu0 0
        %662 = vmatprep.subr.bf16.mxu0 0
        %663 = vmatpush1.bf16.xpose.msra.mxu0 0
        %664 = vmatprep.subr.bf16.mxu0 0
        %665 = vmatpush1.bf16.xpose.msra.mxu0 0
        %666 = vmatprep.subr.bf16.mxu0 0
        %667 = vmatpush1.bf16.xpose.msra.mxu0 0
        %668 = vmatprep.mubr.bf16.mxu0 0
        %669 = vmatmul.mubr.bf16.gmra.mrb[0].mxu0 %v631
        %v670 = vpop.f32.mrb[0].mxu0
        %v671 = vadd.f32 %v524, %v670
        %v672 = vpop.f32.mrb[0].mxu0
        %v673 = vpop.f32.mrb[0].mxu0
        %v674 = vpop.f32.mrb[0].mxu0
        %675 = vdwg.mxu0
        %vm676 = vcmask 64512
        %v677 = vsel %vm676, %v671, -inf
        %678 = vmax.xlane.f32.xlu0 %v677
        %v679 = vpop.xlane.xlu0 %678
        %v680 = vsub.f32 %v671, %v679
        %v681 = vmul.f32 %v680, 1.442695
        %v682 = vpow.pop %v681
        %v683 = vsel %vm676, %v682, 0.0
        %684 = vadd.xlane.f32.xlu0 %v683
        %v685 = vpop.xlane.xlu0 %684
        %v686 = vrcp.pop %v685
        %v687 = vmul.f32 %v682, %v686
        %v688 = vpack.c.bf16 %v687, %v687
        %689 = vrot.lane.b32.xlu0 %v625, 64
        %v690 = vpop.permute.xlu0 %689
        %v692 = vsel %vm676, %v688, 0
        %vm694 = vcmask 1043456
        %v696 = vsel %vm694, %v690, 0
        %698 = vmatprep.subr.bf16.mxu0 0
        %699 = vmatpush1.bf16.msra.mxu0 %v696
        %700 = vmatprep.subr.bf16.mxu0 0
        %701 = vmatpush1.bf16.msra.mxu0 0
        %702 = vmatprep.subr.bf16.mxu0 0
        %703 = vmatpush1.bf16.msra.mxu0 0
        %704 = vmatprep.subr.bf16.mxu0 0
        %705 = vmatpush1.bf16.msra.mxu0 0
        %706 = vmatprep.subr.bf16.mxu0 0
        %707 = vmatpush1.bf16.msra.mxu0 0
        %708 = vmatprep.subr.bf16.mxu0 0
        %709 = vmatpush1.bf16.msra.mxu0 0
        %710 = vmatprep.subr.bf16.mxu0 0
        %711 = vmatpush1.bf16.msra.mxu0 0
        %712 = vmatprep.subr.bf16.mxu0 0
        %713 = vmatpush1.bf16.msra.mxu0 0
        %714 = vmatprep.subr.bf16.mxu0 0
        %715 = vmatpush1.bf16.msra.mxu0 0
        %716 = vmatprep.subr.bf16.mxu0 0
        %717 = vmatpush1.bf16.msra.mxu0 0
        %718 = vmatprep.subr.bf16.mxu0 0
        %719 = vmatpush1.bf16.msra.mxu0 0
        %720 = vmatprep.subr.bf16.mxu0 0
        %721 = vmatpush1.bf16.msra.mxu0 0
        %722 = vmatprep.subr.bf16.mxu0 0
        %723 = vmatpush1.bf16.msra.mxu0 0
        %724 = vmatprep.subr.bf16.mxu0 0
        %725 = vmatpush1.bf16.msra.mxu0 0
        %726 = vmatprep.subr.bf16.mxu0 0
        %727 = vmatpush1.bf16.msra.mxu0 0
        %728 = vmatprep.subr.bf16.mxu0 0
        %729 = vmatpush1.bf16.msra.mxu0 0
        %730 = vmatprep.mubr.bf16.mxu0 0
        %731 = vmatmul.mubr.bf16.gmra.mrb[0].mxu0 %v692
        %v732 = vpop.f32.mrb[0].mxu0
        %v733 = vadd.f32 0.0, %v732
        %v734 = vpop.f32.mrb[0].mxu0
        %v735 = vpop.f32.mrb[0].mxu0
        %v736 = vpop.f32.mrb[0].mxu0
        %737 = vdwg.mxu0
        %739 = vrot.lane.b32.xlu0 %v624, 112
        %v740 = vpop.permute.xlu0 %739
        %741 = vrot.lane.b32.xlu0 %v625, 80
        %v742 = vpop.permute.xlu0 %741
        %v744 = vsel %vm629, %v740, 0
        %v747 = vsel %vm629, %v742, 0
        %749 = vmatprep.subr.bf16.mxu0 0
        %750 = vmatpush1.bf16.xpose.msra.mxu0 %v747
        %751 = vmatprep.subr.bf16.mxu0 0
        %752 = vmatpush1.bf16.xpose.msra.mxu0 0
        %753 = vmatprep.subr.bf16.mxu0 0
        %754 = vmatpush1.bf16.xpose.msra.mxu0 0
        %755 = vmatprep.subr.bf16.mxu0 0
        %756 = vmatpush1.bf16.xpose.msra.mxu0 0
        %757 = vmatprep.subr.bf16.mxu0 0
        %758 = vmatpush1.bf16.xpose.msra.mxu0 0
        %759 = vmatprep.subr.bf16.mxu0 0
        %760 = vmatpush1.bf16.xpose.msra.mxu0 0
        %761 = vmatprep.subr.bf16.mxu0 0
        %762 = vmatpush1.bf16.xpose.msra.mxu0 0
        %763 = vmatprep.subr.bf16.mxu0 0
        %764 = vmatpush1.bf16.xpose.msra.mxu0 0
        %765 = vmatprep.subr.bf16.mxu0 0
        %766 = vmatpush1.bf16.xpose.msra.mxu0 0
        %767 = vmatprep.subr.bf16.mxu0 0
        %768 = vmatpush1.bf16.xpose.msra.mxu0 0
        %769 = vmatprep.subr.bf16.mxu0 0
        %770 = vmatpush1.bf16.xpose.msra.mxu0 0
        %771 = vmatprep.subr.bf16.mxu0 0
        %772 = vmatpush1.bf16.xpose.msra.mxu0 0
        %773 = vmatprep.subr.bf16.mxu0 0
        %774 = vmatpush1.bf16.xpose.msra.mxu0 0
        %775 = vmatprep.subr.bf16.mxu0 0
        %776 = vmatpush1.bf16.xpose.msra.mxu0 0
        %777 = vmatprep.subr.bf16.mxu0 0
        %778 = vmatpush1.bf16.xpose.msra.mxu0 0
        %779 = vmatprep.subr.bf16.mxu0 0
        %780 = vmatpush1.bf16.xpose.msra.mxu0 0
        %781 = vmatprep.mubr.bf16.mxu0 0
        %782 = vmatmul.mubr.bf16.gmra.mrb[0].mxu0 %v744
        %v783 = vpop.f32.mrb[0].mxu0
        %v784 = vadd.f32 %v524, %v783
        %v785 = vpop.f32.mrb[0].mxu0
        %v786 = vpop.f32.mrb[0].mxu0
        %v787 = vpop.f32.mrb[0].mxu0
        %788 = vdwg.mxu0
        %v789 = vsel %vm676, %v784, -inf
        %790 = vmax.xlane.f32.xlu0 %v789
        %v791 = vpop.xlane.xlu0 %790
        %v792 = vsub.f32 %v784, %v791
        %v793 = vmul.f32 %v792, 1.442695
        %v794 = vpow.pop %v793
        %v795 = vsel %vm676, %v794, 0.0
        %796 = vadd.xlane.f32.xlu0 %v795
        %v797 = vpop.xlane.xlu0 %796
        %v798 = vrcp.pop %v797
        %v799 = vmul.f32 %v794, %v798
        %v800 = vpack.c.bf16 %v799, %v799
        %801 = vrot.lane.b32.xlu0 %v625, 48
        %v802 = vpop.permute.xlu0 %801
        %v804 = vsel %vm676, %v800, 0
        %v807 = vsel %vm694, %v802, 0
        %809 = vmatprep.subr.bf16.mxu0 0
        %810 = vmatpush1.bf16.msra.mxu0 %v807
        %811 = vmatprep.subr.bf16.mxu0 0
        %812 = vmatpush1.bf16.msra.mxu0 0
        %813 = vmatprep.subr.bf16.mxu0 0
        %814 = vmatpush1.bf16.msra.mxu0 0
        %815 = vmatprep.subr.bf16.mxu0 0
        %816 = vmatpush1.bf16.msra.mxu0 0
        %817 = vmatprep.subr.bf16.mxu0 0
        %818 = vmatpush1.bf16.msra.mxu0 0
        %819 = vmatprep.subr.bf16.mxu0 0
        %820 = vmatpush1.bf16.msra.mxu0 0
        %821 = vmatprep.subr.bf16.mxu0 0
        %822 = vmatpush1.bf16.msra.mxu0 0
        %823 = vmatprep.subr.bf16.mxu0 0
        %824 = vmatpush1.bf16.msra.mxu0 0
        %825 = vmatprep.subr.bf16.mxu0 0
        %826 = vmatpush1.bf16.msra.mxu0 0
        %827 = vmatprep.subr.bf16.mxu0 0
        %828 = vmatpush1.bf16.msra.mxu0 0
        %829 = vmatprep.subr.bf16.mxu0 0
        %830 = vmatpush1.bf16.msra.mxu0 0
        %831 = vmatprep.subr.bf16.mxu0 0
        %832 = vmatpush1.bf16.msra.mxu0 0
        %833 = vmatprep.subr.bf16.mxu0 0
        %834 = vmatpush1.bf16.msra.mxu0 0
        %835 = vmatprep.subr.bf16.mxu0 0
        %836 = vmatpush1.bf16.msra.mxu0 0
        %837 = vmatprep.subr.bf16.mxu0 0
        %838 = vmatpush1.bf16.msra.mxu0 0
        %839 = vmatprep.subr.bf16.mxu0 0
        %840 = vmatpush1.bf16.msra.mxu0 0
        %841 = vmatprep.mubr.bf16.mxu0 0
        %842 = vmatmul.mubr.bf16.gmra.mrb[0].mxu0 %v804
        %v843 = vpop.f32.mrb[0].mxu0
        %v844 = vadd.f32 0.0, %v843
        %v845 = vpop.f32.mrb[0].mxu0
        %v846 = vpop.f32.mrb[0].mxu0
        %v847 = vpop.f32.mrb[0].mxu0
        %848 = vdwg.mxu0
        %850 = vrot.lane.b32.xlu0 %v844, 16
        %v851 = vpop.permute.xlu0 %850
        %v853 = vsel %vm629, %v733, %v851
        %v854 = vpack.c.bf16 %v853, %v853
        %v855 = vld [vmem:[%s5] sm:$0xf]
        %v856 = vld [vmem:[%s5 + $0x4] sm:$0xf]
        %v857 = vld [vmem:[%s5 + $0x8] sm:$0xf]
        %v858 = vld [vmem:[%s5 + $0xc] sm:$0xf]
        %v859 = vld [vmem:[%s6] sm:$0x1]
        %v861 = vlaneseq
        %v862 = vshrl.u32 %v861, 7
        %v863 = vsub.s32 0, %v862
        %v864 = vrot.slane %v859, %v863
        %v870 = vunpack.c.l.b16 %v855
        %v871 = vunpack.c.l.b16 %v856
        %v872 = vunpack.c.l.b16 %v857
        %v873 = vunpack.c.l.b16 %v858
        %v874 = vpack.c.b16 %v871, %v870
        %v875 = vpack.c.b16 %v873, %v872
        %v879 = vsel %vm527, %v854, 0
        %881 = vmatprep.subr.bf16.mxu0 0
        %882 = vmatpush1.bf16.msra.mxu0 %v874
        %883 = vmatprep.subr.bf16.mxu0 0
        %884 = vmatpush1.bf16.msra.mxu0 %v875
        %885 = vmatprep.subr.bf16.mxu0 0
        %886 = vmatpush1.bf16.msra.mxu0 0
        %887 = vmatprep.subr.bf16.mxu0 0
        %888 = vmatpush1.bf16.msra.mxu0 0
        %889 = vmatprep.subr.bf16.mxu0 0
        %890 = vmatpush1.bf16.msra.mxu0 0
        %891 = vmatprep.subr.bf16.mxu0 0
        %892 = vmatpush1.bf16.msra.mxu0 0
        %893 = vmatprep.subr.bf16.mxu0 0
        %894 = vmatpush1.bf16.msra.mxu0 0
        %895 = vmatprep.subr.bf16.mxu0 0
        %896 = vmatpush1.bf16.msra.mxu0 0
        %897 = vmatprep.subr.bf16.mxu0 0
        %898 = vmatpush1.bf16.msra.mxu0 0
        %899 = vmatprep.subr.bf16.mxu0 0
        %900 = vmatpush1.bf16.msra.mxu0 0
        %901 = vmatprep.subr.bf16.mxu0 0
        %902 = vmatpush1.bf16.msra.mxu0 0
        %903 = vmatprep.subr.bf16.mxu0 0
        %904 = vmatpush1.bf16.msra.mxu0 0
        %905 = vmatprep.subr.bf16.mxu0 0
        %906 = vmatpush1.bf16.msra.mxu0 0
        %907 = vmatprep.subr.bf16.mxu0 0
        %908 = vmatpush1.bf16.msra.mxu0 0
        %909 = vmatprep.subr.bf16.mxu0 0
        %910 = vmatpush1.bf16.msra.mxu0 0
        %911 = vmatprep.subr.bf16.mxu0 0
        %912 = vmatpush1.bf16.msra.mxu0 0
        %913 = vmatprep.mubr.bf16.mxu0 0
        %914 = vmatmul.mubr.bf16.gmra.mrb[0].mxu0 %v879
        %v915 = vpop.f32.mrb[0].mxu0
        %v916 = vadd.f32 %v864, %v915
        %v917 = vpop.f32.mrb[0].mxu0
        %v918 = vpop.f32.mrb[0].mxu0
        %v919 = vpop.f32.mrb[0].mxu0
        %920 = vdwg.mxu0
        %v921 = vadd.f32 %v518, %v916
        %v922 = vld [vmem:[%s7] sm:$0x1]
        %v923 = vld [vmem:[%s8] sm:$0x1]
        %v924 = vsel %vm527, %v921, 0.0
        %925 = vadd.xlane.f32.xlu0 %v924
        %v926 = vpop.xlane.xlu0 %925
        %v927 = vmul.f32 %v926, %v531
        %v928 = vsub.f32 %v921, %v927
        %v929 = vmul.f32 %v928, %v928
        %v930 = vsel %vm527, %v929, 0.0
        %931 = vadd.xlane.f32.xlu0 %v930
        %v932 = vpop.xlane.xlu0 %931
        %v933 = vmul.f32 %v932, %v531
        %v934 = vadd.f32 %v933, 1e-05
        %v935 = vrsqrt.pop %v934
        %v936 = vmul.f32 %v928, %v935
        %v938 = vlaneseq
        %v939 = vshrl.u32 %v938, 7
        %v940 = vsub.s32 0, %v939
        %v941 = vrot.slane %v922, %v940
        %v943 = vmul.f32 %v936, %v941
        %v945 = vlaneseq
        %v946 = vshrl.u32 %v945, 7
        %v947 = vsub.s32 0, %v946
        %v948 = vrot.slane %v923, %v947
        %v950 = vadd.f32 %v943, %v948
        %v951 = vpack.c.bf16 %v950, %v950
        %v952 = vld [vmem:[%s9] sm:$0xf]
        %v953 = vld [vmem:[%s9 + $0x4] sm:$0xf]
        %v954 = vld [vmem:[%s9 + $0x8] sm:$0xf]
        %v955 = vld [vmem:[%s9 + $0xc] sm:$0xf]
        %v956 = vld [vmem:[%s10] sm:$0x1]
        %v958 = vlaneseq
        %v959 = vshrl.u32 %v958, 7
        %v960 = vsub.s32 0, %v959
        %v961 = vrot.slane %v956, %v960
        %v967 = vunpack.c.l.b16 %v952
        %v968 = vunpack.c.l.b16 %v953
        %v969 = vunpack.c.l.b16 %v954
        %v970 = vunpack.c.l.b16 %v955
        %v971 = vpack.c.b16 %v968, %v967
        %v972 = vpack.c.b16 %v970, %v969
        %v976 = vsel %vm527, %v951, 0
        %978 = vmatprep.subr.bf16.mxu0 0
        %979 = vmatpush1.bf16.msra.mxu0 %v971
        %980 = vmatprep.subr.bf16.mxu0 0
        %981 = vmatpush1.bf16.msra.mxu0 %v972
        %982 = vmatprep.subr.bf16.mxu0 0
        %983 = vmatpush1.bf16.msra.mxu0 0
        %984 = vmatprep.subr.bf16.mxu0 0
        %985 = vmatpush1.bf16.msra.mxu0 0
        %986 = vmatprep.subr.bf16.mxu0 0
        %987 = vmatpush1.bf16.msra.mxu0 0
        %988 = vmatprep.subr.bf16.mxu0 0
        %989 = vmatpush1.bf16.msra.mxu0 0
        %990 = vmatprep.subr.bf16.mxu0 0
        %991 = vmatpush1.bf16.msra.mxu0 0
        %992 = vmatprep.subr.bf16.mxu0 0
        %993 = vmatpush1.bf16.msra.mxu0 0
        %994 = vmatprep.subr.bf16.mxu0 0
        %995 = vmatpush1.bf16.msra.mxu0 0
        %996 = vmatprep.subr.bf16.mxu0 0
        %997 = vmatpush1.bf16.msra.mxu0 0
        %998 = vmatprep.subr.bf16.mxu0 0
        %999 = vmatpush1.bf16.msra.mxu0 0
        %1000 = vmatprep.subr.bf16.mxu0 0
        %1001 = vmatpush1.bf16.msra.mxu0 0
        %1002 = vmatprep.subr.bf16.mxu0 0
        %1003 = vmatpush1.bf16.msra.mxu0 0
        %1004 = vmatprep.subr.bf16.mxu0 0
        %1005 = vmatpush1.bf16.msra.mxu0 0
        %1006 = vmatprep.subr.bf16.mxu0 0
        %1007 = vmatpush1.bf16.msra.mxu0 0
        %1008 = vmatprep.subr.bf16.mxu0 0
        %1009 = vmatpush1.bf16.msra.mxu0 0
        %1010 = vmatprep.mubr.bf16.mxu0 0
        %1011 = vmatmul.mubr.bf16.gmra.mrb[0].mxu0 %v976
        %v1012 = vpop.f32.mrb[0].mxu0
        %v1013 = vadd.f32 %v961, %v1012
        %v1014 = vpop.f32.mrb[0].mxu0
        %v1015 = vpop.f32.mrb[0].mxu0
        %v1016 = vpop.f32.mrb[0].mxu0
        %1017 = vdwg.mxu0
        %v1018 = vmul.f32 %v1013, 0.5
        %v1019 = vmul.f32 %v1013, 0.044715
        %v1020 = vmul.f32 %v1019, %v1013
        %v1021 = vmul.f32 %v1020, %v1013
        %v1022 = vadd.f32 %v1013, %v1021
        %v1023 = vmul.f32 %v1022, 0.7978846
        %v1024 = vtanh.pop %v1023
        %v1025 = vadd.f32 %v1024, 1.0
        %v1026 = vmul.f32 %v1018, %v1025
        %v1027 = vpack.c.bf16 %v1026, %v1026
        %v1028 = vld [vmem:[%s11] sm:$0xf]
        %v1029 = vld [vmem:[%s11 + $0x4] sm:$0xf]
        %v1030 = vld [vmem:[%s11 + $0x8] sm:$0xf]
        %v1031 = vld [vmem:[%s11 + $0xc] sm:$0xf]
        %v1032 = vld [vmem:[%s11 + $0x10] sm:$0xf]
        %v1033 = vld [vmem:[%s11 + $0x14] sm:$0xf]
        %v1034 = vld [vmem:[%s11 + $0x18] sm:$0xf]
        %v1035 = vld [vmem:[%s11 + $0x1c] sm:$0xf]
        %v1036 = vld [vmem:[%s11 + $0x20] sm:$0xf]
        %v1037 = vld [vmem:[%s11 + $0x24] sm:$0xf]
        %v1038 = vld [vmem:[%s11 + $0x28] sm:$0xf]
        %v1039 = vld [vmem:[%s11 + $0x2c] sm:$0xf]
        %v1040 = vld [vmem:[%s11 + $0x30] sm:$0xf]
        %v1041 = vld [vmem:[%s11 + $0x34] sm:$0xf]
        %v1042 = vld [vmem:[%s11 + $0x38] sm:$0xf]
        %v1043 = vld [vmem:[%s11 + $0x3c] sm:$0xf]
        %v1060 = vunpack.c.l.b16 %v1028
        %v1061 = vunpack.c.l.b16 %v1029
        %v1062 = vunpack.c.l.b16 %v1030
        %v1063 = vunpack.c.l.b16 %v1031
        %v1064 = vunpack.c.l.b16 %v1032
        %v1065 = vunpack.c.l.b16 %v1033
        %v1066 = vunpack.c.l.b16 %v1034
        %v1067 = vunpack.c.l.b16 %v1035
        %v1068 = vunpack.c.l.b16 %v1036
        %v1069 = vunpack.c.l.b16 %v1037
        %v1070 = vunpack.c.l.b16 %v1038
        %v1071 = vunpack.c.l.b16 %v1039
        %v1072 = vunpack.c.l.b16 %v1040
        %v1073 = vunpack.c.l.b16 %v1041
        %v1074 = vunpack.c.l.b16 %v1042
        %v1075 = vunpack.c.l.b16 %v1043
        %v1076 = vpack.c.b16 %v1061, %v1060
        %v1077 = vpack.c.b16 %v1063, %v1062
        %v1078 = vpack.c.b16 %v1065, %v1064
        %v1079 = vpack.c.b16 %v1067, %v1066
        %v1080 = vpack.c.b16 %v1069, %v1068
        %v1081 = vpack.c.b16 %v1071, %v1070
        %v1082 = vpack.c.b16 %v1073, %v1072
        %v1083 = vpack.c.b16 %v1075, %v1074
        %1092 = vmatprep.subr.bf16.mxu0 0
        %1093 = vmatpush1.bf16.msra.mxu0 %v1076
        %1094 = vmatprep.subr.bf16.mxu0 0
        %1095 = vmatpush1.bf16.msra.mxu0 %v1077
        %1096 = vmatprep.subr.bf16.mxu0 0
        %1097 = vmatpush1.bf16.msra.mxu0 %v1078
        %1098 = vmatprep.subr.bf16.mxu0 0
        %1099 = vmatpush1.bf16.msra.mxu0 %v1079
        %1100 = vmatprep.subr.bf16.mxu0 0
        %1101 = vmatpush1.bf16.msra.mxu0 %v1080
        %1102 = vmatprep.subr.bf16.mxu0 0
        %1103 = vmatpush1.bf16.msra.mxu0 %v1081
        %1104 = vmatprep.subr.bf16.mxu0 0
        %1105 = vmatpush1.bf16.msra.mxu0 %v1082
        %1106 = vmatprep.subr.bf16.mxu0 0
        %1107 = vmatpush1.bf16.msra.mxu0 %v1083
        %1108 = vmatprep.subr.bf16.mxu0 0
        %1109 = vmatpush1.bf16.msra.mxu0 0
        %1110 = vmatprep.subr.bf16.mxu0 0
        %1111 = vmatpush1.bf16.msra.mxu0 0
        %1112 = vmatprep.subr.bf16.mxu0 0
        %1113 = vmatpush1.bf16.msra.mxu0 0
        %1114 = vmatprep.subr.bf16.mxu0 0
        %1115 = vmatpush1.bf16.msra.mxu0 0
        %1116 = vmatprep.subr.bf16.mxu0 0
        %1117 = vmatpush1.bf16.msra.mxu0 0
        %1118 = vmatprep.subr.bf16.mxu0 0
        %1119 = vmatpush1.bf16.msra.mxu0 0
        %1120 = vmatprep.subr.bf16.mxu0 0
        %1121 = vmatpush1.bf16.msra.mxu0 0
        %1122 = vmatprep.subr.bf16.mxu0 0
        %1123 = vmatpush1.bf16.msra.mxu0 0
        %1124 = vmatprep.mubr.bf16.mxu0 0
        %1125 = vmatmul.mubr.bf16.gmra.mrb[0].mxu0 %v1027
        %v1126 = vpop.f32.mrb[0].mxu0
        %v1127 = vadd.f32 0.0, %v1126
        %v1128 = vpop.f32.mrb[0].mxu0
        %v1129 = vpop.f32.mrb[0].mxu0
        %v1130 = vpop.f32.mrb[0].mxu0
        %1131 = vdwg.mxu0
        %v1132 = vadd.f32 %v921, %v1127
        %v1133 = vld [vmem:[%s12] sm:$0x1]
        %v1135 = vlaneseq
        %v1136 = vshrl.u32 %v1135, 7
        %v1137 = vsub.s32 0, %v1136
        %v1138 = vrot.slane %v1133, %v1137
        %v1140 = vadd.f32 %v1132, %v1138
        %s1141 = scalar_lea.vmem %s1, 1
        %v1142 = vld [vmem:[%s1141] sm:$0x1]
        %s1143 = scalar_lea.vmem %s2, 1
        %v1144 = vld [vmem:[%s1143] sm:$0x1]
        %v1145 = vsel %vm527, %v1140, 0.0
        %1146 = vadd.xlane.f32.xlu0 %v1145
        %v1147 = vpop.xlane.xlu0 %1146
        %v1148 = vmul.f32 %v1147, %v531
        %v1149 = vsub.f32 %v1140, %v1148
        %v1150 = vmul.f32 %v1149, %v1149
        %v1151 = vsel %vm527, %v1150, 0.0
        %1152 = vadd.xlane.f32.xlu0 %v1151
        %v1153 = vpop.xlane.xlu0 %1152
        %v1154 = vmul.f32 %v1153, %v531
        %v1155 = vadd.f32 %v1154, 1e-05
        %v1156 = vrsqrt.pop %v1155
        %v1157 = vmul.f32 %v1149, %v1156
        %v1159 = vlaneseq
        %v1160 = vshrl.u32 %v1159, 7
        %v1161 = vsub.s32 0, %v1160
        %v1162 = vrot.slane %v1142, %v1161
        %v1164 = vmul.f32 %v1157, %v1162
        %v1166 = vlaneseq
        %v1167 = vshrl.u32 %v1166, 7
        %v1168 = vsub.s32 0, %v1167
        %v1169 = vrot.slane %v1144, %v1168
        %v1171 = vadd.f32 %v1164, %v1169
        %v1172 = vpack.c.bf16 %v1171, %v1171
        %s1173 = scalar_lea.vmem %s3, 16
        %v1174 = vld [vmem:[%s1173] sm:$0xf]
        %v1175 = vld [vmem:[%s1173 + $0x4] sm:$0xf]
        %v1176 = vld [vmem:[%s1173 + $0x8] sm:$0xf]
        %v1177 = vld [vmem:[%s1173 + $0xc] sm:$0xf]
        %s1178 = scalar_lea.vmem %s4, 1
        %v1179 = vld [vmem:[%s1178] sm:$0x1]
        %v1181 = vlaneseq
        %v1182 = vshrl.u32 %v1181, 7
        %v1183 = vsub.s32 0, %v1182
        %v1184 = vrot.slane %v1179, %v1183
        %v1190 = vunpack.c.l.b16 %v1174
        %v1191 = vunpack.c.l.b16 %v1175
        %v1192 = vunpack.c.l.b16 %v1176
        %v1193 = vunpack.c.l.b16 %v1177
        %v1194 = vpack.c.b16 %v1191, %v1190
        %v1195 = vpack.c.b16 %v1193, %v1192
        %v1199 = vsel %vm527, %v1172, 0
        %1201 = vmatprep.subr.bf16.mxu0 0
        %1202 = vmatpush1.bf16.msra.mxu0 %v1194
        %1203 = vmatprep.subr.bf16.mxu0 0
        %1204 = vmatpush1.bf16.msra.mxu0 %v1195
        %1205 = vmatprep.subr.bf16.mxu0 0
        %1206 = vmatpush1.bf16.msra.mxu0 0
        %1207 = vmatprep.subr.bf16.mxu0 0
        %1208 = vmatpush1.bf16.msra.mxu0 0
        %1209 = vmatprep.subr.bf16.mxu0 0
        %1210 = vmatpush1.bf16.msra.mxu0 0
        %1211 = vmatprep.subr.bf16.mxu0 0
        %1212 = vmatpush1.bf16.msra.mxu0 0
        %1213 = vmatprep.subr.bf16.mxu0 0
        %1214 = vmatpush1.bf16.msra.mxu0 0
        %1215 = vmatprep.subr.bf16.mxu0 0
        %1216 = vmatpush1.bf16.msra.mxu0 0
        %1217 = vmatprep.subr.bf16.mxu0 0
        %1218 = vmatpush1.bf16.msra.mxu0 0
        %1219 = vmatprep.subr.bf16.mxu0 0
        %1220 = vmatpush1.bf16.msra.mxu0 0
        %1221 = vmatprep.subr.bf16.mxu0 0
        %1222 = vmatpush1.bf16.msra.mxu0 0
        %1223 = vmatprep.subr.bf16.mxu0 0
        %1224 = vmatpush1.bf16.msra.mxu0 0
        %1225 = vmatprep.subr.bf16.mxu0 0
        %1226 = vmatpush1.bf16.msra.mxu0 0
        %1227 = vmatprep.subr.bf16.mxu0 0
        %1228 = vmatpush1.bf16.msra.mxu0 0
        %1229 = vmatprep.subr.bf16.mxu0 0
        %1230 = vmatpush1.bf16.msra.mxu0 0
        %1231 = vmatprep.subr.bf16.mxu0 0
        %1232 = vmatpush1.bf16.msra.mxu0 0
        %1233 = vmatprep.mubr.bf16.mxu0 0
        %1234 = vmatmul.mubr.bf16.gmra.mrb[0].mxu0 %v1199
        %v1235 = vpop.f32.mrb[0].mxu0
        %v1236 = vadd.f32 %v1184, %v1235
        %v1237 = vpop.f32.mrb[0].mxu0
        %v1238 = vpop.f32.mrb[0].mxu0
        %v1239 = vpop.f32.mrb[0].mxu0
        %1240 = vdwg.mxu0
        %v1241 = vmul.f32 %v1236, 0.25
        %v1242 = vpack.c.bf16 %v1241, %v1241
        %v1243 = vpack.c.bf16 %v1236, %v1236
        %1245 = vrot.lane.b32.xlu0 %v1243, 96
        %v1246 = vpop.permute.xlu0 %1245
        %v1248 = vsel %vm629, %v1242, 0
        %v1251 = vsel %vm629, %v1246, 0
        %1253 = vmatprep.subr.bf16.mxu0 0
        %1254 = vmatpush1.bf16.xpose.msra.mxu0 %v1251
        %1255 = vmatprep.subr.bf16.mxu0 0
        %1256 = vmatpush1.bf16.xpose.msra.mxu0 0
        %1257 = vmatprep.subr.bf16.mxu0 0
        %1258 = vmatpush1.bf16.xpose.msra.mxu0 0
        %1259 = vmatprep.subr.bf16.mxu0 0
        %1260 = vmatpush1.bf16.xpose.msra.mxu0 0
        %1261 = vmatprep.subr.bf16.mxu0 0
        %1262 = vmatpush1.bf16.xpose.msra.mxu0 0
        %1263 = vmatprep.subr.bf16.mxu0 0
        %1264 = vmatpush1.bf16.xpose.msra.mxu0 0
        %1265 = vmatprep.subr.bf16.mxu0 0
        %1266 = vmatpush1.bf16.xpose.msra.mxu0 0
        %1267 = vmatprep.subr.bf16.mxu0 0
        %1268 = vmatpush1.bf16.xpose.msra.mxu0 0
        %1269 = vmatprep.subr.bf16.mxu0 0
        %1270 = vmatpush1.bf16.xpose.msra.mxu0 0
        %1271 = vmatprep.subr.bf16.mxu0 0
        %1272 = vmatpush1.bf16.xpose.msra.mxu0 0
        %1273 = vmatprep.subr.bf16.mxu0 0
        %1274 = vmatpush1.bf16.xpose.msra.mxu0 0
        %1275 = vmatprep.subr.bf16.mxu0 0
        %1276 = vmatpush1.bf16.xpose.msra.mxu0 0
        %1277 = vmatprep.subr.bf16.mxu0 0
        %1278 = vmatpush1.bf16.xpose.msra.mxu0 0
        %1279 = vmatprep.subr.bf16.mxu0 0
        %1280 = vmatpush1.bf16.xpose.msra.mxu0 0
        %1281 = vmatprep.subr.bf16.mxu0 0
        %1282 = vmatpush1.bf16.xpose.msra.mxu0 0
        %1283 = vmatprep.subr.bf16.mxu0 0
        %1284 = vmatpush1.bf16.xpose.msra.mxu0 0
        %1285 = vmatprep.mubr.bf16.mxu0 0
        %1286 = vmatmul.mubr.bf16.gmra.mrb[0].mxu0 %v1248
        %v1287 = vpop.f32.mrb[0].mxu0
        %v1288 = vadd.f32 %v524, %v1287
        %v1289 = vpop.f32.mrb[0].mxu0
        %v1290 = vpop.f32.mrb[0].mxu0
        %v1291 = vpop.f32.mrb[0].mxu0
        %1292 = vdwg.mxu0
        %v1293 = vsel %vm676, %v1288, -inf
        %1294 = vmax.xlane.f32.xlu0 %v1293
        %v1295 = vpop.xlane.xlu0 %1294
        %v1296 = vsub.f32 %v1288, %v1295
        %v1297 = vmul.f32 %v1296, 1.442695
        %v1298 = vpow.pop %v1297
        %v1299 = vsel %vm676, %v1298, 0.0
        %1300 = vadd.xlane.f32.xlu0 %v1299
        %v1301 = vpop.xlane.xlu0 %1300
        %v1302 = vrcp.pop %v1301
        %v1303 = vmul.f32 %v1298, %v1302
        %v1304 = vpack.c.bf16 %v1303, %v1303
        %1305 = vrot.lane.b32.xlu0 %v1243, 64
        %v1306 = vpop.permute.xlu0 %1305
        %v1308 = vsel %vm676, %v1304, 0
        %v1311 = vsel %vm694, %v1306, 0
        %1313 = vmatprep.subr.bf16.mxu0 0
        %1314 = vmatpush1.bf16.msra.mxu0 %v1311
        %1315 = vmatprep.subr.bf16.mxu0 0
        %1316 = vmatpush1.bf16.msra.mxu0 0
        %1317 = vmatprep.subr.bf16.mxu0 0
        %1318 = vmatpush1.bf16.msra.mxu0 0
        %1319 = vmatprep.subr.bf16.mxu0 0
        %1320 = vmatpush1.bf16.msra.mxu0 0
        %1321 = vmatprep.subr.bf16.mxu0 0
        %1322 = vmatpush1.bf16.msra.mxu0 0
        %1323 = vmatprep.subr.bf16.mxu0 0
        %1324 = vmatpush1.bf16.msra.mxu0 0
        %1325 = vmatprep.subr.bf16.mxu0 0
        %1326 = vmatpush1.bf16.msra.mxu0 0
        %1327 = vmatprep.subr.bf16.mxu0 0
        %1328 = vmatpush1.bf16.msra.mxu0 0
        %1329 = vmatprep.subr.bf16.mxu0 0
        %1330 = vmatpush1.bf16.msra.mxu0 0
        %1331 = vmatprep.subr.bf16.mxu0 0
        %1332 = vmatpush1.bf16.msra.mxu0 0
        %1333 = vmatprep.subr.bf16.mxu0 0
        %1334 = vmatpush1.bf16.msra.mxu0 0
        %1335 = vmatprep.subr.bf16.mxu0 0
        %1336 = vmatpush1.bf16.msra.mxu0 0
        %1337 = vmatprep.subr.bf16.mxu0 0
        %1338 = vmatpush1.bf16.msra.mxu0 0
        %1339 = vmatprep.subr.bf16.mxu0 0
        %1340 = vmatpush1.bf16.msra.mxu0 0
        %1341 = vmatprep.subr.bf16.mxu0 0
        %1342 = vmatpush1.bf16.msra.mxu0 0
        %1343 = vmatprep.subr.bf16.mxu0 0
        %1344 = vmatpush1.bf16.msra.mxu0 0
        %1345 = vmatprep.mubr.bf16.mxu0 0
        %1346 = vmatmul.mubr.bf16.gmra.mrb[0].mxu0 %v1308
        %v1347 = vpop.f32.mrb[0].mxu0
        %v1348 = vadd.f32 0.0, %v1347
        %v1349 = vpop.f32.mrb[0].mxu0
        %v1350 = vpop.f32.mrb[0].mxu0
        %v1351 = vpop.f32.mrb[0].mxu0
        %1352 = vdwg.mxu0
        %1354 = vrot.lane.b32.xlu0 %v1242, 112
        %v1355 = vpop.permute.xlu0 %1354
        %1356 = vrot.lane.b32.xlu0 %v1243, 80
        %v1357 = vpop.permute.xlu0 %1356
        %v1359 = vsel %vm629, %v1355, 0
        %v1362 = vsel %vm629, %v1357, 0
        %1364 = vmatprep.subr.bf16.mxu0 0
        %1365 = vmatpush1.bf16.xpose.msra.mxu0 %v1362
        %1366 = vmatprep.subr.bf16.mxu0 0
        %1367 = vmatpush1.bf16.xpose.msra.mxu0 0
        %1368 = vmatprep.subr.bf16.mxu0 0
        %1369 = vmatpush1.bf16.xpose.msra.mxu0 0
        %1370 = vmatprep.subr.bf16.mxu0 0
        %1371 = vmatpush1.bf16.xpose.msra.mxu0 0
        %1372 = vmatprep.subr.bf16.mxu0 0
        %1373 = vmatpush1.bf16.xpose.msra.mxu0 0
        %1374 = vmatprep.subr.bf16.mxu0 0
        %1375 = vmatpush1.bf16.xpose.msra.mxu0 0
        %1376 = vmatprep.subr.bf16.mxu0 0
        %1377 = vmatpush1.bf16.xpose.msra.mxu0 0
        %1378 = vmatprep.subr.bf16.mxu0 0
        %1379 = vmatpush1.bf16.xpose.msra.mxu0 0
        %1380 = vmatprep.subr.bf16.mxu0 0
        %1381 = vmatpush1.bf16.xpose.msra.mxu0 0
        %1382 = vmatprep.subr.bf16.mxu0 0
        %1383 = vmatpush1.bf16.xpose.msra.mxu0 0
        %1384 = vmatprep.subr.bf16.mxu0 0
        %1385 = vmatpush1.bf16.xpose.msra.mxu0 0
        %1386 = vmatprep.subr.bf16.mxu0 0
        %1387 = vmatpush1.bf16.xpose.msra.mxu0 0
        %1388 = vmatprep.subr.bf16.mxu0 0
        %1389 = vmatpush1.bf16.xpose.msra.mxu0 0
        %1390 = vmatprep.subr.bf16.mxu0 0
        %1391 = vmatpush1.bf16.xpose.msra.mxu0 0
        %1392 = vmatprep.subr.bf16.mxu0 0
        %1393 = vmatpush1.bf16.xpose.msra.mxu0 0
        %1394 = vmatprep.subr.bf16.mxu0 0
        %1395 = vmatpush1.bf16.xpose.msra.mxu0 0
        %1396 = vmatprep.mubr.bf16.mxu0 0
        %1397 = vmatmul.mubr.bf16.gmra.mrb[0].mxu0 %v1359
        %v1398 = vpop.f32.mrb[0].mxu0
        %v1399 = vadd.f32 %v524, %v1398
        %v1400 = vpop.f32.mrb[0].mxu0
        %v1401 = vpop.f32.mrb[0].mxu0
        %v1402 = vpop.f32.mrb[0].mxu0
        %1403 = vdwg.mxu0
        %v1404 = vsel %vm676, %v1399, -inf
        %1405 = vmax.xlane.f32.xlu0 %v1404
        %v1406 = vpop.xlane.xlu0 %1405
        %v1407 = vsub.f32 %v1399, %v1406
        %v1408 = vmul.f32 %v1407, 1.442695
        %v1409 = vpow.pop %v1408
        %v1410 = vsel %vm676, %v1409, 0.0
        %1411 = vadd.xlane.f32.xlu0 %v1410
        %v1412 = vpop.xlane.xlu0 %1411
        %v1413 = vrcp.pop %v1412
        %v1414 = vmul.f32 %v1409, %v1413
        %v1415 = vpack.c.bf16 %v1414, %v1414
        %1416 = vrot.lane.b32.xlu0 %v1243, 48
        %v1417 = vpop.permute.xlu0 %1416
        %v1419 = vsel %vm676, %v1415, 0
        %v1422 = vsel %vm694, %v1417, 0
        %1424 = vmatprep.subr.bf16.mxu0 0
        %1425 = vmatpush1.bf16.msra.mxu0 %v1422
        %1426 = vmatprep.subr.bf16.mxu0 0
        %1427 = vmatpush1.bf16.msra.mxu0 0
        %1428 = vmatprep.subr.bf16.mxu0 0
        %1429 = vmatpush1.bf16.msra.mxu0 0
        %1430 = vmatprep.subr.bf16.mxu0 0
        %1431 = vmatpush1.bf16.msra.mxu0 0
        %1432 = vmatprep.subr.bf16.mxu0 0
        %1433 = vmatpush1.bf16.msra.mxu0 0
        %1434 = vmatprep.subr.bf16.mxu0 0
        %1435 = vmatpush1.bf16.msra.mxu0 0
        %1436 = vmatprep.subr.bf16.mxu0 0
        %1437 = vmatpush1.bf16.msra.mxu0 0
        %1438 = vmatprep.subr.bf16.mxu0 0
        %1439 = vmatpush1.bf16.msra.mxu0 0
        %1440 = vmatprep.subr.bf16.mxu0 0
        %1441 = vmatpush1.bf16.msra.mxu0 0
        %1442 = vmatprep.subr.bf16.mxu0 0
        %1443 = vmatpush1.bf16.msra.mxu0 0
        %1444 = vmatprep.subr.bf16.mxu0 0
        %1445 = vmatpush1.bf16.msra.mxu0 0
        %1446 = vmatprep.subr.bf16.mxu0 0
        %1447 = vmatpush1.bf16.msra.mxu0 0
        %1448 = vmatprep.subr.bf16.mxu0 0
        %1449 = vmatpush1.bf16.msra.mxu0 0
        %1450 = vmatprep.subr.bf16.mxu0 0
        %1451 = vmatpush1.bf16.msra.mxu0 0
        %1452 = vmatprep.subr.bf16.mxu0 0
        %1453 = vmatpush1.bf16.msra.mxu0 0
        %1454 = vmatprep.subr.bf16.mxu0 0
        %1455 = vmatpush1.bf16.msra.mxu0 0
        %1456 = vmatprep.mubr.bf16.mxu0 0
        %1457 = vmatmul.mubr.bf16.gmra.mrb[0].mxu0 %v1419
        %v1458 = vpop.f32.mrb[0].mxu0
        %v1459 = vadd.f32 0.0, %v1458
        %v1460 = vpop.f32.mrb[0].mxu0
        %v1461 = vpop.f32.mrb[0].mxu0
        %v1462 = vpop.f32.mrb[0].mxu0
        %1463 = vdwg.mxu0
        %1465 = vrot.lane.b32.xlu0 %v1459, 16
        %v1466 = vpop.permute.xlu0 %1465
        %v1468 = vsel %vm629, %v1348, %v1466
        %v1469 = vpack.c.bf16 %v1468, %v1468
        %s1470 = scalar_lea.vmem %s5, 16
        %v1471 = vld [vmem:[%s1470] sm:$0xf]
        %v1472 = vld [vmem:[%s1470 + $0x4] sm:$0xf]
        %v1473 = vld [vmem:[%s1470 + $0x8] sm:$0xf]
        %v1474 = vld [vmem:[%s1470 + $0xc] sm:$0xf]
        %s1475 = scalar_lea.vmem %s6, 1
        %v1476 = vld [vmem:[%s1475] sm:$0x1]
        %v1478 = vlaneseq
        %v1479 = vshrl.u32 %v1478, 7
        %v1480 = vsub.s32 0, %v1479
        %v1481 = vrot.slane %v1476, %v1480
        %v1487 = vunpack.c.l.b16 %v1471
        %v1488 = vunpack.c.l.b16 %v1472
        %v1489 = vunpack.c.l.b16 %v1473
        %v1490 = vunpack.c.l.b16 %v1474
        %v1491 = vpack.c.b16 %v1488, %v1487
        %v1492 = vpack.c.b16 %v1490, %v1489
        %v1496 = vsel %vm527, %v1469, 0
        %1498 = vmatprep.subr.bf16.mxu0 0
        %1499 = vmatpush1.bf16.msra.mxu0 %v1491
        %1500 = vmatprep.subr.bf16.mxu0 0
        %1501 = vmatpush1.bf16.msra.mxu0 %v1492
        %1502 = vmatprep.subr.bf16.mxu0 0
        %1503 = vmatpush1.bf16.msra.mxu0 0
        %1504 = vmatprep.subr.bf16.mxu0 0
        %1505 = vmatpush1.bf16.msra.mxu0 0
        %1506 = vmatprep.subr.bf16.mxu0 0
        %1507 = vmatpush1.bf16.msra.mxu0 0
        %1508 = vmatprep.subr.bf16.mxu0 0
        %1509 = vmatpush1.bf16.msra.mxu0 0
        %1510 = vmatprep.subr.bf16.mxu0 0
        %1511 = vmatpush1.bf16.msra.mxu0 0
        %1512 = vmatprep.subr.bf16.mxu0 0
        %1513 = vmatpush1.bf16.msra.mxu0 0
        %1514 = vmatprep.subr.bf16.mxu0 0
        %1515 = vmatpush1.bf16.msra.mxu0 0
        %1516 = vmatprep.subr.bf16.mxu0 0
        %1517 = vmatpush1.bf16.msra.mxu0 0
        %1518 = vmatprep.subr.bf16.mxu0 0
        %1519 = vmatpush1.bf16.msra.mxu0 0
        %1520 = vmatprep.subr.bf16.mxu0 0
        %1521 = vmatpush1.bf16.msra.mxu0 0
        %1522 = vmatprep.subr.bf16.mxu0 0
        %1523 = vmatpush1.bf16.msra.mxu0 0
        %1524 = vmatprep.subr.bf16.mxu0 0
        %1525 = vmatpush1.bf16.msra.mxu0 0
        %1526 = vmatprep.subr.bf16.mxu0 0
        %1527 = vmatpush1.bf16.msra.mxu0 0
        %1528 = vmatprep.subr.bf16.mxu0 0
        %1529 = vmatpush1.bf16.msra.mxu0 0
        %1530 = vmatprep.mubr.bf16.mxu0 0
        %1531 = vmatmul.mubr.bf16.gmra.mrb[0].mxu0 %v1496
        %v1532 = vpop.f32.mrb[0].mxu0
        %v1533 = vadd.f32 %v1481, %v1532
        %v1534 = vpop.f32.mrb[0].mxu0
        %v1535 = vpop.f32.mrb[0].mxu0
        %v1536 = vpop.f32.mrb[0].mxu0
        %1537 = vdwg.mxu0
        %v1538 = vadd.f32 %v1140, %v1533
        %s1539 = scalar_lea.vmem %s7, 1
        %v1540 = vld [vmem:[%s1539] sm:$0x1]
        %s1541 = scalar_lea.vmem %s8, 1
        %v1542 = vld [vmem:[%s1541] sm:$0x1]
        %v1543 = vsel %vm527, %v1538, 0.0
        %1544 = vadd.xlane.f32.xlu0 %v1543
        %v1545 = vpop.xlane.xlu0 %1544
        %v1546 = vmul.f32 %v1545, %v531
        %v1547 = vsub.f32 %v1538, %v1546
        %v1548 = vmul.f32 %v1547, %v1547
        %v1549 = vsel %vm527, %v1548, 0.0
        %1550 = vadd.xlane.f32.xlu0 %v1549
        %v1551 = vpop.xlane.xlu0 %1550
        %v1552 = vmul.f32 %v1551, %v531
        %v1553 = vadd.f32 %v1552, 1e-05
        %v1554 = vrsqrt.pop %v1553
        %v1555 = vmul.f32 %v1547, %v1554
        %v1557 = vlaneseq
        %v1558 = vshrl.u32 %v1557, 7
        %v1559 = vsub.s32 0, %v1558
        %v1560 = vrot.slane %v1540, %v1559
        %v1562 = vmul.f32 %v1555, %v1560
        %v1564 = vlaneseq
        %v1565 = vshrl.u32 %v1564, 7
        %v1566 = vsub.s32 0, %v1565
        %v1567 = vrot.slane %v1542, %v1566
        %v1569 = vadd.f32 %v1562, %v1567
        %v1570 = vpack.c.bf16 %v1569, %v1569
        %s1571 = scalar_lea.vmem %s9, 16
        %v1572 = vld [vmem:[%s1571] sm:$0xf]
        %v1573 = vld [vmem:[%s1571 + $0x4] sm:$0xf]
        %v1574 = vld [vmem:[%s1571 + $0x8] sm:$0xf]
        %v1575 = vld [vmem:[%s1571 + $0xc] sm:$0xf]
        %s1576 = scalar_lea.vmem %s10, 1
        %v1577 = vld [vmem:[%s1576] sm:$0x1]
        %v1579 = vlaneseq
        %v1580 = vshrl.u32 %v1579, 7
        %v1581 = vsub.s32 0, %v1580
        %v1582 = vrot.slane %v1577, %v1581
        %v1588 = vunpack.c.l.b16 %v1572
        %v1589 = vunpack.c.l.b16 %v1573
        %v1590 = vunpack.c.l.b16 %v1574
        %v1591 = vunpack.c.l.b16 %v1575
        %v1592 = vpack.c.b16 %v1589, %v1588
        %v1593 = vpack.c.b16 %v1591, %v1590
        %v1597 = vsel %vm527, %v1570, 0
        %1599 = vmatprep.subr.bf16.mxu0 0
        %1600 = vmatpush1.bf16.msra.mxu0 %v1592
        %1601 = vmatprep.subr.bf16.mxu0 0
        %1602 = vmatpush1.bf16.msra.mxu0 %v1593
        %1603 = vmatprep.subr.bf16.mxu0 0
        %1604 = vmatpush1.bf16.msra.mxu0 0
        %1605 = vmatprep.subr.bf16.mxu0 0
        %1606 = vmatpush1.bf16.msra.mxu0 0
        %1607 = vmatprep.subr.bf16.mxu0 0
        %1608 = vmatpush1.bf16.msra.mxu0 0
        %1609 = vmatprep.subr.bf16.mxu0 0
        %1610 = vmatpush1.bf16.msra.mxu0 0
        %1611 = vmatprep.subr.bf16.mxu0 0
        %1612 = vmatpush1.bf16.msra.mxu0 0
        %1613 = vmatprep.subr.bf16.mxu0 0
        %1614 = vmatpush1.bf16.msra.mxu0 0
        %1615 = vmatprep.subr.bf16.mxu0 0
        %1616 = vmatpush1.bf16.msra.mxu0 0
        %1617 = vmatprep.subr.bf16.mxu0 0
        %1618 = vmatpush1.bf16.msra.mxu0 0
        %1619 = vmatprep.subr.bf16.mxu0 0
        %1620 = vmatpush1.bf16.msra.mxu0 0
        %1621 = vmatprep.subr.bf16.mxu0 0
        %1622 = vmatpush1.bf16.msra.mxu0 0
        %1623 = vmatprep.subr.bf16.mxu0 0
        %1624 = vmatpush1.bf16.msra.mxu0 0
        %1625 = vmatprep.subr.bf16.mxu0 0
        %1626 = vmatpush1.bf16.msra.mxu0 0
        %1627 = vmatprep.subr.bf16.mxu0 0
        %1628 = vmatpush1.bf16.msra.mxu0 0
        %1629 = vmatprep.subr.bf16.mxu0 0
        %1630 = vmatpush1.bf16.msra.mxu0 0
        %1631 = vmatprep.mubr.bf16.mxu0 0
        %1632 = vmatmul.mubr.bf16.gmra.mrb[0].mxu0 %v1597
        %v1633 = vpop.f32.mrb[0].mxu0
        %v1634 = vadd.f32 %v1582, %v1633
        %v1635 = vpop.f32.mrb[0].mxu0
        %v1636 = vpop.f32.mrb[0].mxu0
        %v1637 = vpop.f32.mrb[0].mxu0
        %1638 = vdwg.mxu0
        %v1639 = vmul.f32 %v1634, 0.5
        %v1640 = vmul.f32 %v1634, 0.044715
        %v1641 = vmul.f32 %v1640, %v1634
        %v1642 = vmul.f32 %v1641, %v1634
        %v1643 = vadd.f32 %v1634, %v1642
        %v1644 = vmul.f32 %v1643, 0.7978846
        %v1645 = vtanh.pop %v1644
        %v1646 = vadd.f32 %v1645, 1.0
        %v1647 = vmul.f32 %v1639, %v1646
        %v1648 = vpack.c.bf16 %v1647, %v1647
        %s1649 = scalar_lea.vmem %s11, 64
        %v1650 = vld [vmem:[%s1649] sm:$0xf]
        %v1651 = vld [vmem:[%s1649 + $0x4] sm:$0xf]
        %v1652 = vld [vmem:[%s1649 + $0x8] sm:$0xf]
        %v1653 = vld [vmem:[%s1649 + $0xc] sm:$0xf]
        %v1654 = vld [vmem:[%s1649 + $0x10] sm:$0xf]
        %v1655 = vld [vmem:[%s1649 + $0x14] sm:$0xf]
        %v1656 = vld [vmem:[%s1649 + $0x18] sm:$0xf]
        %v1657 = vld [vmem:[%s1649 + $0x1c] sm:$0xf]
        %v1658 = vld [vmem:[%s1649 + $0x20] sm:$0xf]
        %v1659 = vld [vmem:[%s1649 + $0x24] sm:$0xf]
        %v1660 = vld [vmem:[%s1649 + $0x28] sm:$0xf]
        %v1661 = vld [vmem:[%s1649 + $0x2c] sm:$0xf]
        %v1662 = vld [vmem:[%s1649 + $0x30] sm:$0xf]
        %v1663 = vld [vmem:[%s1649 + $0x34] sm:$0xf]
        %v1664 = vld [vmem:[%s1649 + $0x38] sm:$0xf]
        %v1665 = vld [vmem:[%s1649 + $0x3c] sm:$0xf]
        %v1682 = vunpack.c.l.b16 %v1650
        %v1683 = vunpack.c.l.b16 %v1651
        %v1684 = vunpack.c.l.b16 %v1652
        %v1685 = vunpack.c.l.b16 %v1653
        %v1686 = vunpack.c.l.b16 %v1654
        %v1687 = vunpack.c.l.b16 %v1655
        %v1688 = vunpack.c.l.b16 %v1656
        %v1689 = vunpack.c.l.b16 %v1657
        %v1690 = vunpack.c.l.b16 %v1658
        %v1691 = vunpack.c.l.b16 %v1659
        %v1692 = vunpack.c.l.b16 %v1660
        %v1693 = vunpack.c.l.b16 %v1661
        %v1694 = vunpack.c.l.b16 %v1662
        %v1695 = vunpack.c.l.b16 %v1663
        %v1696 = vunpack.c.l.b16 %v1664
        %v1697 = vunpack.c.l.b16 %v1665
        %v1698 = vpack.c.b16 %v1683, %v1682
        %v1699 = vpack.c.b16 %v1685, %v1684
        %v1700 = vpack.c.b16 %v1687, %v1686
        %v1701 = vpack.c.b16 %v1689, %v1688
        %v1702 = vpack.c.b16 %v1691, %v1690
        %v1703 = vpack.c.b16 %v1693, %v1692
        %v1704 = vpack.c.b16 %v1695, %v1694
        %v1705 = vpack.c.b16 %v1697, %v1696
        %1714 = vmatprep.subr.bf16.mxu0 0
        %1715 = vmatpush1.bf16.msra.mxu0 %v1698
        %1716 = vmatprep.subr.bf16.mxu0 0
        %1717 = vmatpush1.bf16.msra.mxu0 %v1699
        %1718 = vmatprep.subr.bf16.mxu0 0
        %1719 = vmatpush1.bf16.msra.mxu0 %v1700
        %1720 = vmatprep.subr.bf16.mxu0 0
        %1721 = vmatpush1.bf16.msra.mxu0 %v1701
        %1722 = vmatprep.subr.bf16.mxu0 0
        %1723 = vmatpush1.bf16.msra.mxu0 %v1702
        %1724 = vmatprep.subr.bf16.mxu0 0
        %1725 = vmatpush1.bf16.msra.mxu0 %v1703
        %1726 = vmatprep.subr.bf16.mxu0 0
        %1727 = vmatpush1.bf16.msra.mxu0 %v1704
        %1728 = vmatprep.subr.bf16.mxu0 0
        %1729 = vmatpush1.bf16.msra.mxu0 %v1705
        %1730 = vmatprep.subr.bf16.mxu0 0
        %1731 = vmatpush1.bf16.msra.mxu0 0
        %1732 = vmatprep.subr.bf16.mxu0 0
        %1733 = vmatpush1.bf16.msra.mxu0 0
        %1734 = vmatprep.subr.bf16.mxu0 0
        %1735 = vmatpush1.bf16.msra.mxu0 0
        %1736 = vmatprep.subr.bf16.mxu0 0
        %1737 = vmatpush1.bf16.msra.mxu0 0
        %1738 = vmatprep.subr.bf16.mxu0 0
        %1739 = vmatpush1.bf16.msra.mxu0 0
        %1740 = vmatprep.subr.bf16.mxu0 0
        %1741 = vmatpush1.bf16.msra.mxu0 0
        %1742 = vmatprep.subr.bf16.mxu0 0
        %1743 = vmatpush1.bf16.msra.mxu0 0
        %1744 = vmatprep.subr.bf16.mxu0 0
        %1745 = vmatpush1.bf16.msra.mxu0 0
        %1746 = vmatprep.mubr.bf16.mxu0 0
        %1747 = vmatmul.mubr.bf16.gmra.mrb[0].mxu0 %v1648
        %v1748 = vpop.f32.mrb[0].mxu0
        %v1749 = vadd.f32 0.0, %v1748
        %v1750 = vpop.f32.mrb[0].mxu0
        %v1751 = vpop.f32.mrb[0].mxu0
        %v1752 = vpop.f32.mrb[0].mxu0
        %1753 = vdwg.mxu0
        %v1754 = vadd.f32 %v1538, %v1749
        %s1755 = scalar_lea.vmem %s12, 1
        %v1756 = vld [vmem:[%s1755] sm:$0x1]
        %v1758 = vlaneseq
        %v1759 = vshrl.u32 %v1758, 7
        %v1760 = vsub.s32 0, %v1759
        %v1761 = vrot.slane %v1756, %v1760
        %v1763 = vadd.f32 %v1754, %v1761
        %v1764 = vld [vmem:[%s13] sm:$0x1]
        %v1765 = vld [vmem:[%s14] sm:$0x1]
        %v1766 = vsel %vm527, %v1763, 0.0
        %1767 = vadd.xlane.f32.xlu0 %v1766
        %v1768 = vpop.xlane.xlu0 %1767
        %v1769 = vmul.f32 %v1768, %v531
        %v1770 = vsub.f32 %v1763, %v1769
        %v1771 = vmul.f32 %v1770, %v1770
        %v1772 = vsel %vm527, %v1771, 0.0
        %1773 = vadd.xlane.f32.xlu0 %v1772
        %v1774 = vpop.xlane.xlu0 %1773
        %v1775 = vmul.f32 %v1774, %v531
        %v1776 = vadd.f32 %v1775, 1e-05
        %v1777 = vrsqrt.pop %v1776
        %v1778 = vmul.f32 %v1770, %v1777
        %v1780 = vlaneseq
        %v1781 = vshrl.u32 %v1780, 7
        %v1782 = vsub.s32 0, %v1781
        %v1783 = vrot.slane %v1764, %v1782
        %v1785 = vmul.f32 %v1778, %v1783
        %v1787 = vlaneseq
        %v1788 = vshrl.u32 %v1787, 7
        %v1789 = vsub.s32 0, %v1788
        %v1790 = vrot.slane %v1765, %v1789
        %v1792 = vadd.f32 %v1785, %v1790
        %v1793 = vpack.c.bf16 %v1792, %v1792
        %v1794 = vld [vmem:[%s15] sm:$0xf]
        %v1795 = vld [vmem:[%s15 + $0x4] sm:$0xf]
        %v1796 = vld [vmem:[%s15 + $0x8] sm:$0xf]
        %v1797 = vld [vmem:[%s15 + $0xc] sm:$0xf]
        %v1802 = vunpack.c.l.b16 %v1794
        %v1803 = vunpack.c.l.b16 %v1795
        %v1804 = vunpack.c.l.b16 %v1796
        %v1805 = vunpack.c.l.b16 %v1797
        %v1806 = vpack.c.b16 %v1803, %v1802
        %v1807 = vpack.c.b16 %v1805, %v1804
        %v1811 = vsel %vm527, %v1793, 0
        %1813 = vmatprep.subr.bf16.mxu0 0
        %1814 = vmatpush1.bf16.msra.mxu0 %v1806
        %1815 = vmatprep.subr.bf16.mxu0 0
        %1816 = vmatpush1.bf16.msra.mxu0 %v1807
        %1817 = vmatprep.subr.bf16.mxu0 0
        %1818 = vmatpush1.bf16.msra.mxu0 0
        %1819 = vmatprep.subr.bf16.mxu0 0
        %1820 = vmatpush1.bf16.msra.mxu0 0
        %1821 = vmatprep.subr.bf16.mxu0 0
        %1822 = vmatpush1.bf16.msra.mxu0 0
        %1823 = vmatprep.subr.bf16.mxu0 0
        %1824 = vmatpush1.bf16.msra.mxu0 0
        %1825 = vmatprep.subr.bf16.mxu0 0
        %1826 = vmatpush1.bf16.msra.mxu0 0
        %1827 = vmatprep.subr.bf16.mxu0 0
        %1828 = vmatpush1.bf16.msra.mxu0 0
        %1829 = vmatprep.subr.bf16.mxu0 0
        %1830 = vmatpush1.bf16.msra.mxu0 0
        %1831 = vmatprep.subr.bf16.mxu0 0
        %1832 = vmatpush1.bf16.msra.mxu0 0
        %1833 = vmatprep.subr.bf16.mxu0 0
        %1834 = vmatpush1.bf16.msra.mxu0 0
        %1835 = vmatprep.subr.bf16.mxu0 0
        %1836 = vmatpush1.bf16.msra.mxu0 0
        %1837 = vmatprep.subr.bf16.mxu0 0
        %1838 = vmatpush1.bf16.msra.mxu0 0
        %1839 = vmatprep.subr.bf16.mxu0 0
        %1840 = vmatpush1.bf16.msra.mxu0 0
        %1841 = vmatprep.subr.bf16.mxu0 0
        %1842 = vmatpush1.bf16.msra.mxu0 0
        %1843 = vmatprep.subr.bf16.mxu0 0
        %1844 = vmatpush1.bf16.msra.mxu0 0
        %1845 = vmatprep.mubr.bf16.mxu0 0
        %1846 = vmatmul.mubr.bf16.gmra.mrb[0].mxu0 %v1811
        %v1847 = vpop.f32.mrb[0].mxu0
        %v1848 = vadd.f32 0.0, %v1847
        %v1849 = vpop.f32.mrb[0].mxu0
        %v1850 = vpop.f32.mrb[0].mxu0
        %v1851 = vpop.f32.mrb[0].mxu0
        %1852 = vdwg.mxu0
        %1853 = vst [vmem:[%s512] sm:$0xff] %v1848
        %s1854 = sand.u32 %s379, 1
        %s1855 = scalar_lea.sflag [#allocation3], %s1854
        %s1856 = sand.u32 %s379, 1
        %s1857 = smul.addr %s1856, 8
        %s1858 = scalar_lea.vmem [#allocation2], %s1857
        // Predicated region
        $region85: #{_lambda_.1} parent=83 // pred_check
          %p1859 = pneg %p389
        $region86: #{_lambda_.1} parent=83 // pred_check_branch
          %1861 = sbr.rel (%p1859) target = $region88
        $region87: #{_lambda_.1} parent=83 // pred_region
          %s1863 = ssub.s32 128, 128
          %1864 = vsyncadd %s1855, %s1863
          %s1865 = smul.addr %s30, 128
          %s1866 = scalar_lea.hbm %s16, %s1865
          %s1868 = sshll.u32 %s1858, 4
          %s1869 = int_to_ptr.vmem [resolvable:$true] %s1868
          %1871 = dma.vmem_to_hbm [thread:$0]  %s1869, 128, %s1866, %s1855
        $region88: #{_lambda_.1} parent=83 // pred_fallthru
          _
      $region84: #{_lambda_.1} parent=5 // pred_fallthru
        _
      %p1872 = scmp.le.s32.totalorder 2, %s25
      // Predicated region
      $region89: #{_lambda_.1} parent=5 // pred_check
        %p1873 = pneg %p1872
      $region90: #{_lambda_.1} parent=5 // pred_check_branch
        %1875 = sbr.rel (%p1873) target = $region92
      $region91: #{_lambda_.1} parent=5 // pred_region
        %s1876 = ssub.s32 %s25, 2
        // Predicated region
        $region93: #{_lambda_.1} parent=91 // pred_check
          %p1877 = pneg %p395
        $region94: #{_lambda_.1} parent=91 // pred_check_branch
          %1879 = sbr.rel (%p1877) target = $region96
        $region95: #{_lambda_.1} parent=91 // pred_region
          %s1880 = sand.u32 %s380, 1
          %s1881 = scalar_lea.sflag [#allocation3], %s1880
          %s1882 = sand.u32 %s380, 1
          %s1883 = smul.addr %s1882, 8
          %s1884 = scalar_lea.vmem [#allocation2], %s1883
          %1885 = dma.done %s1881, 128
        $region96: #{_lambda_.1} parent=91 // pred_fallthru
          _
      $region92: #{_lambda_.1} parent=5 // pred_fallthru
        _
    $region6: #{_lambda_.1} parent=1 // loop_footer
      %s29 = sadd.s32 1, %s25
    $region7: #{_lambda_.1} parent=1 // loop_footer_branch
      %24 = sbr.rel target = $region3
    $region8: #{_lambda_.1} parent=1 // loop_exit
      _
    %1886 = vsyncpa [#allocation3], 1
    %s1887 = scalar_lea.sflag [#allocation3], 1
    %1888 = vsyncpa %s1887, 1

</llo_original>
